<compile_context>
chip_gen: v6e
topology: v6e:2x2x1
jax: 0.10.0
libtpu: 0.0.40
codegen_flags: <defaults>
</compile_context>

<pallas_src>
import jax
import jax.numpy as jnp
from jax.experimental import pallas as pl
from jax.experimental.pallas import tpu as pltpu

PADDING = 8
LANES = 128


def _kernel(x1_ref, freq_ref, wt_ref, bt_ref, out_ref):
    # x1_ref  : (1, TR, 128)    VMEM  lane-dense branch features (fc0 + pad already applied)
    # freq_ref: (C, 1)          VMEM  trunk frequencies
    # wt_ref  : (1, 128)        VMEM  trunk fc0 weight, tiled 128//W times along lanes
    # bt_ref  : (1, 128)        VMEM  trunk fc0 bias,   tiled 128//W times along lanes
    # out_ref : (1, C, TR, 128) VMEM  lane-dense output tile
    # Trunk fc0 (the spec module): x2[c, :] = freq[c] * wt + bt, lane-tiled to 128.
    x2 = freq_ref[...] * wt_ref[...] + bt_ref[...]          # (C, 128)
    x1 = x1_ref[0]                                          # (TR, 128)
    # einsum('bwxyz,cz->bcwxyz') == outer broadcast over the lane-packed width dim.
    out_ref[0] = x2[:, None, :] * x1[None, :, :]            # (C, TR, 128)


def _pick_block_rows(rows, C, target_out_bytes=4 << 20):
    """Largest TR dividing `rows` (multiple of 8, or rows itself) so the f32 out
    block C*TR*128*4 stays under `target_out_bytes` (keeps v7x VMEM happy)."""
    cap = max(1, target_out_bytes // (C * LANES * 4))
    for cand in range(min(cap, rows), 0, -1):
        if rows % cand == 0 and (cand % 8 == 0 or cand == rows):
            return cand
    return rows  # fall back to the full extent (always a legal block shape)


def branch_trunk(branch_rho, trunk_freq, wb, bb, wt, bt, *,
                 target_out_block_bytes=4 << 20):
    """branch_rho: (B, D1, D2, D3, 1); trunk_freq: (C, 1); wb/bb/wt/bt: (W,)."""
    B, D1, D2, D3, _ = branch_rho.shape
    C = trunk_freq.shape[0]
    W = wb.shape[0]
    n1, n2, n3 = D1 + PADDING, D2 + PADDING, D3 + PADDING
    S = n1 * n2 * n3

    assert LANES % W == 0, "width must divide 128 for lane packing"
    pack = LANES // W
    assert S % pack == 0, "padded spatial size must be a multiple of 128 // W"
    R = (S * W) // LANES          # lane-packed rows per (batch, trunk point)

    f32 = jnp.float32
    # Branch fc0 on the un-padded field, then zero-pad AFTER (identical to the
    # torch module, so the padded region is exactly 0, not the bias).  This is
    # only B*S*W elements -- tiny next to the B*C*S*W output -- so it is done
    # once here instead of C times inside the kernel (per the perf review).
    x1 = branch_rho.astype(f32)[..., :1] * wb.astype(f32) + bb.astype(f32)
    x1 = jnp.pad(x1, ((0, 0), (0, PADDING), (0, PADDING), (0, PADDING), (0, 0)))
    x1 = x1.reshape(B, R, LANES)          # pure view of (B, S, W): lane-dense

    wt_t = jnp.tile(wt.astype(f32).reshape(1, W), (1, pack))   # (1, 128)
    bt_t = jnp.tile(bt.astype(f32).reshape(1, W), (1, pack))   # (1, 128)
    freq = trunk_freq.astype(f32).reshape(C, 1)

    TR = _pick_block_rows(R, C, target_out_block_bytes)
    ns = R // TR

    def const_spec(shape):
        return pl.BlockSpec(shape, lambda b, s: (0, 0))

    out = pl.pallas_call(
        _kernel,
        out_shape=jax.ShapeDtypeStruct((B, C, R, LANES), f32),
        grid_spec=pltpu.PrefetchScalarGridSpec(
            num_scalar_prefetch=0,
            grid=(B, ns),
            in_specs=[
                pl.BlockSpec((1, TR, LANES), lambda b, s: (b, s, 0)),   # x1 tile
                const_spec((C, 1)),                                     # freq
                const_spec((1, LANES)),                                 # wt (tiled)
                const_spec((1, LANES)),                                 # bt (tiled)
            ],
            out_specs=pl.BlockSpec((1, C, TR, LANES), lambda b, s: (b, 0, s, 0)),
        ),
        compiler_params=pltpu.CompilerParams(
            dimension_semantics=("parallel", "parallel")),
    )(x1, freq, wt_t, bt_t)

    # Flat memory order of (B, C, R, 128) equals (B, C, S, W): the final reshape
    # (torch's x.view(-1, n1, n2, n3, W)) is a pure view, no transpose.
    return out.reshape(B * C, n1, n2, n3, W)


def reference(branch_rho, trunk_freq, wb, bb, wt, bt):
    """Pure-JAX mirror of the PyTorch forward."""
    x1 = branch_rho[..., 0][..., None] * wb + bb                      # (B,D1,D2,D3,W)
    x1 = jnp.pad(x1, ((0, 0), (0, PADDING), (0, PADDING), (0, PADDING), (0, 0)))
    x2 = trunk_freq[:, 0][:, None] * wt + bt                          # (C,W)
    out = jnp.einsum('bwxyz,cz->bcwxyz', x1, x2)
    n1, n2, n3, W = x1.shape[1], x1.shape[2], x1.shape[3], x1.shape[4]
    return out.reshape(-1, n1, n2, n3, W)


if __name__ == "__main__":
    B, D1, D2, D3 = 2, 8, 8, 8   # branch spatial field
    C = 4                        # trunk query points
    W = 32                       # width

    key = jax.random.PRNGKey(0)
    k1, k2, k3, k4, k5, k6 = jax.random.split(key, 6)
    branch_rho = jax.random.normal(k1, (B, D1, D2, D3, 1), jnp.float32)
    trunk_freq = jax.random.normal(k2, (C, 1), jnp.float32)
    # Deterministic Linear(1, W) params (weight[:, 0] and bias for branch / trunk).
    wb = 0.5 * jax.random.normal(k3, (W,), jnp.float32)
    bb = 0.1 * jax.random.normal(k4, (W,), jnp.float32)
    wt = 0.5 * jax.random.normal(k5, (W,), jnp.float32)
    bt = 0.1 * jax.random.normal(k6, (W,), jnp.float32)

    out = jax.jit(branch_trunk)(branch_rho, trunk_freq, wb, bb, wt, bt)
    out = jax.block_until_ready(out)

    ref = reference(branch_rho, trunk_freq, wb, bb, wt, bt)
    assert out.shape == (B * C, D1 + PADDING, D2 + PADDING, D3 + PADDING, W), out.shape
    assert jnp.allclose(out, ref, atol=1e-5, rtol=1e-5), float(jnp.max(jnp.abs(out - ref)))
    print("KERNEL_OK")
</pallas_src>

<mosaic_0001>
module attributes {stable_mosaic.version = 11 : i64} {
  func.func @_kernel(%arg0: i32, %arg1: i32, %arg2: memref<1x1024x128xf32, #tpu.memory_space<vmem>>, %arg3: memref<4x1xf32, #tpu.memory_space<vmem>>, %arg4: memref<1x128xf32, #tpu.memory_space<vmem>>, %arg5: memref<1x128xf32, #tpu.memory_space<vmem>>, %arg6: memref<1x4x1024x128xf32, #tpu.memory_space<vmem>>) attributes {dimension_semantics = [#tpu.dimension_semantics<parallel>, #tpu.dimension_semantics<parallel>], iteration_bounds = array<i64: 2, 1>, scalar_prefetch = 0 : i64, scratch_operands = 0 : i64, tpu.core_type = #tpu.core_type<tc>, window_params = [{transform_indices = @transform_0, window_bounds = array<i64: 1, 1024, 128>}, {pipeline_mode = #tpu.pipeline_mode<synchronous>, transform_indices = @transform_1, window_bounds = array<i64: 4, 1>}, {pipeline_mode = #tpu.pipeline_mode<synchronous>, transform_indices = @transform_2, window_bounds = array<i64: 1, 128>}, {pipeline_mode = #tpu.pipeline_mode<synchronous>, transform_indices = @transform_3, window_bounds = array<i64: 1, 128>}, {transform_indices = @transform_4, window_bounds = array<i64: 1, 4, 1024, 128>}]} {
    %c0 = arith.constant 0 : index
    %c0_0 = arith.constant 0 : index
    %0 = vector.load %arg3[%c0, %c0_0] : memref<4x1xf32, #tpu.memory_space<vmem>>, vector<4x1xf32>
    %c0_1 = arith.constant 0 : index
    %c0_2 = arith.constant 0 : index
    %1 = vector.load %arg4[%c0_1, %c0_2] : memref<1x128xf32, #tpu.memory_space<vmem>>, vector<1x128xf32>
    %2 = vector.broadcast %0 : vector<4x1xf32> to vector<4x128xf32>
    %3 = vector.broadcast %1 : vector<1x128xf32> to vector<4x128xf32>
    %4 = arith.mulf %2, %3 : vector<4x128xf32>
    %c0_3 = arith.constant 0 : index
    %c0_4 = arith.constant 0 : index
    %5 = vector.load %arg5[%c0_3, %c0_4] : memref<1x128xf32, #tpu.memory_space<vmem>>, vector<1x128xf32>
    %6 = vector.broadcast %5 : vector<1x128xf32> to vector<4x128xf32>
    %7 = arith.addf %4, %6 : vector<4x128xf32>
    %c0_5 = arith.constant 0 : index
    %c0_6 = arith.constant 0 : index
    %c0_7 = arith.constant 0 : index
    %8 = vector.load %arg2[%c0_5, %c0_6, %c0_7] : memref<1x1024x128xf32, #tpu.memory_space<vmem>>, vector<1x1024x128xf32>
    %9 = vector.shape_cast %8 : vector<1x1024x128xf32> to vector<1024x128xf32>
    %10 = vector.shape_cast %7 : vector<4x128xf32> to vector<4x1x128xf32>
    %11 = vector.shape_cast %9 : vector<1024x128xf32> to vector<1x1024x128xf32>
    %12 = vector.broadcast %10 : vector<4x1x128xf32> to vector<4x1024x128xf32>
    %13 = vector.broadcast %11 : vector<1x1024x128xf32> to vector<4x1024x128xf32>
    %14 = arith.mulf %12, %13 : vector<4x1024x128xf32>
    %c0_8 = arith.constant 0 : index
    %c0_9 = arith.constant 0 : index
    %c0_10 = arith.constant 0 : index
    %c0_11 = arith.constant 0 : index
    %15 = vector.load %arg6[%c0_8, %c0_9, %c0_10, %c0_11] : memref<1x4x1024x128xf32, #tpu.memory_space<vmem>>, vector<1x4x1024x128xf32>
    %16 = vector.shape_cast %15 : vector<1x4x1024x128xf32> to vector<4x1024x128xf32>
    %17 = vector.shape_cast %14 : vector<4x1024x128xf32> to vector<1x4x1024x128xf32>
    tpu.vector_store %arg6[%c0_8, %c0_9, %c0_10, %c0_11], %17 {strides = array<i32>} : memref<1x4x1024x128xf32, #tpu.memory_space<vmem>>, vector<1x4x1024x128xf32>,
    return
  }
  func.func @transform_0(%arg0: i32, %arg1: i32) -> (i32, i32, i32) {
    %c0_i32 = arith.constant 0 : i32
    %c0_i32_0 = arith.constant 0 : i32
    return %arg0, %arg1, %c0_i32 : i32, i32, i32
  }
  func.func @transform_1(%arg0: i32, %arg1: i32) -> (i32, i32) {
    %c0_i32 = arith.constant 0 : i32
    %c0_i32_0 = arith.constant 0 : i32
    %c0_i32_1 = arith.constant 0 : i32
    return %c0_i32, %c0_i32_0 : i32, i32
  }
  func.func @transform_2(%arg0: i32, %arg1: i32) -> (i32, i32) {
    %c0_i32 = arith.constant 0 : i32
    %c0_i32_0 = arith.constant 0 : i32
    %c0_i32_1 = arith.constant 0 : i32
    return %c0_i32, %c0_i32_0 : i32, i32
  }
  func.func @transform_3(%arg0: i32, %arg1: i32) -> (i32, i32) {
    %c0_i32 = arith.constant 0 : i32
    %c0_i32_0 = arith.constant 0 : i32
    %c0_i32_1 = arith.constant 0 : i32
    return %c0_i32, %c0_i32_0 : i32, i32
  }
  func.func @transform_4(%arg0: i32, %arg1: i32) -> (i32, i32, i32, i32) {
    %c0_i32 = arith.constant 0 : i32
    %c0_i32_0 = arith.constant 0 : i32
    %c0_i32_1 = arith.constant 0 : i32
    return %arg0, %c0_i32, %arg1, %c0_i32_0 : i32, i32, i32, i32
  }
}

</mosaic_0001>

<llo_original>
// kernel: branch_trunk.1
$region0: #{branch_trunk.1}
  #allocation0 [shape = 'u32[]', space=smem, size = 0x4, offset = 0x4, fixed_abs, tag = 'smem constant byte address 0x4 - core index']
  #allocation1 [shape = 'u32[144,128]{1,0:T(1,128)}', space=vmem, size = 0x12000, scoped, tag = 'internal scratch']
  %s0 = inlined_call_operand.vmem [shape: f32[2,1024,128], index: 0, kind: input, shape index: {}]
  %s1 = inlined_call_operand.vmem [shape: f32[4,1], index: 1, kind: input, shape index: {}]
  %s2 = inlined_call_operand.vmem [shape: f32[1,128], index: 2, kind: input, shape index: {}]
  %s3 = inlined_call_operand.vmem [shape: f32[1,128], index: 3, kind: input, shape index: {}]
  %s4 = inlined_call_operand.vmem [shape: f32[2,4,1024,128], index: 4, kind: output, shape index: {}]
  %s5 = sld [smem:[#allocation0]]
  $region49: #{branch_trunk.1} parent=0
    _
  %s7 = ssub.s32 1, %s5
  %s8 = scalar_select 0, %s7, %s5
  loop: start=0, step=1, limit=4
  $region2: #{branch_trunk.1} parent=0 // loop_pre_header
    _
  $region3: #{branch_trunk.1} parent=0 // loop_header
    %s10 = sphi 0, %s14
    %p11 = scmp.ge.s32.totalorder %s10, 4
    %s17 = sphi 0, %s29
    %s18 = sphi 0, %s25
    %s19 = sphi 0, %s17
    %s20 = sphi 0, %s18
    %s21 = sphi 0, %s19
    %s22 = sphi 0, %s20
    %s34 = sphi 0, %s36
    %s37 = sphi 0, %s34
    %s38 = sphi 0, %s37
    %s54 = sphi 0, %s38
    %s58 = sphi 0, %s58
    %s60 = sphi 0, %s58
    %s61 = sphi 0, %s60
    %s75 = sphi 0, %s61
    %s79 = sphi 0, %s79
    %s81 = sphi 0, %s79
    %s82 = sphi 0, %s81
    %s96 = sphi 0, %s82
    %s100 = sphi 0, %s100
    %s102 = sphi 0, %s100
    %s103 = sphi 0, %s102
    %s117 = sphi 0, %s103
    %s125 = sphi 0, %s127
    %s128 = sphi 0, %s125
    %s129 = sphi 0, %s128
    %s145 = sphi 0, %s129
  $region4: #{branch_trunk.1} parent=0 // loop_header_branch
    %13 = sbr.rel (%p11) target = $region8
  $region5: #{branch_trunk.1} parent=0 // loop_body
    %s15 = ssub.s32 %s10, 1
    %s16 = ssub.s32 %s10, 2
    %s23 = sadd.s32 1, %s18
    %p24 = scmp.ge.s32.totalorder %s23, 1
    %s25 = scalar_select %p24, 0, %s23
    %s26 = sadd.s32 1, %s17
    %s27 = scalar_select %p24, %s26, %s17
    %p28 = scmp.ge.s32.totalorder %s27, 2
    %s29 = scalar_select %p28, 0, %s27
    %s30 = ssub.s32 %s17, %s29
    %s31 = ssub.s32 %s18, %s25
    %s32 = sor.u32 %s30, %s31
    %p33 = scmp.eq.s32.totalorder %s32, 0
    %s35 = sadd.s32 %s34, 1
    %s36 = scalar_select %p33, %s34, %s35
    %p39 = pneg %p33
    %p40 = scmp.eq.s32.totalorder %s10, 1
    %p41 = por %p39, %p40
    %p42 = scmp.ne.s32.totalorder %s34, %s37
    %p43 = scmp.eq.s32.totalorder %s10, 0
    %p44 = por %p42, %p43
    %p45 = scmp.ne.s32.totalorder %s34, %s37
    %p46 = scmp.eq.s32.totalorder %s15, 1
    %p47 = por %p45, %p46
    %p48 = scmp.ne.s32.totalorder %s37, %s38
    %p49 = scmp.eq.s32.totalorder %s15, 0
    %p50 = por %p48, %p49
    %p51 = scmp.ne.s32.totalorder %s37, %s38
    %p52 = scmp.eq.s32.totalorder %s16, 1
    %p53 = por %p51, %p52
    %p55 = scmp.ne.s32.totalorder %s38, %s54
    %p56 = scmp.eq.s32.totalorder %s16, 0
    %p57 = por %p55, %p56
    %s59 = sadd.s32 %s58, 1
    %p62 = scmp.eq.s32.totalorder %s10, 1
    %p63 = scmp.ne.s32.totalorder %s58, %s60
    %p64 = scmp.eq.s32.totalorder %s10, 0
    %p65 = por %p63, %p64
    %p66 = scmp.ne.s32.totalorder %s58, %s60
    %p67 = scmp.eq.s32.totalorder %s15, 1
    %p68 = por %p66, %p67
    %p69 = scmp.ne.s32.totalorder %s60, %s61
    %p70 = scmp.eq.s32.totalorder %s15, 0
    %p71 = por %p69, %p70
    %p72 = scmp.ne.s32.totalorder %s60, %s61
    %p73 = scmp.eq.s32.totalorder %s16, 1
    %p74 = por %p72, %p73
    %p76 = scmp.ne.s32.totalorder %s61, %s75
    %p77 = scmp.eq.s32.totalorder %s16, 0
    %p78 = por %p76, %p77
    %s80 = sadd.s32 %s79, 1
    %p83 = scmp.eq.s32.totalorder %s10, 1
    %p84 = scmp.ne.s32.totalorder %s79, %s81
    %p85 = scmp.eq.s32.totalorder %s10, 0
    %p86 = por %p84, %p85
    %p87 = scmp.ne.s32.totalorder %s79, %s81
    %p88 = scmp.eq.s32.totalorder %s15, 1
    %p89 = por %p87, %p88
    %p90 = scmp.ne.s32.totalorder %s81, %s82
    %p91 = scmp.eq.s32.totalorder %s15, 0
    %p92 = por %p90, %p91
    %p93 = scmp.ne.s32.totalorder %s81, %s82
    %p94 = scmp.eq.s32.totalorder %s16, 1
    %p95 = por %p93, %p94
    %p97 = scmp.ne.s32.totalorder %s82, %s96
    %p98 = scmp.eq.s32.totalorder %s16, 0
    %p99 = por %p97, %p98
    %s101 = sadd.s32 %s100, 1
    %p104 = scmp.eq.s32.totalorder %s10, 1
    %p105 = scmp.ne.s32.totalorder %s100, %s102
    %p106 = scmp.eq.s32.totalorder %s10, 0
    %p107 = por %p105, %p106
    %p108 = scmp.ne.s32.totalorder %s100, %s102
    %p109 = scmp.eq.s32.totalorder %s15, 1
    %p110 = por %p108, %p109
    %p111 = scmp.ne.s32.totalorder %s102, %s103
    %p112 = scmp.eq.s32.totalorder %s15, 0
    %p113 = por %p111, %p112
    %p114 = scmp.ne.s32.totalorder %s102, %s103
    %p115 = scmp.eq.s32.totalorder %s16, 1
    %p116 = por %p114, %p115
    %p118 = scmp.ne.s32.totalorder %s103, %s117
    %p119 = scmp.eq.s32.totalorder %s16, 0
    %p120 = por %p118, %p119
    %s121 = ssub.s32 %s17, %s29
    %s122 = ssub.s32 %s18, %s25
    %s123 = sor.u32 %s121, %s122
    %p124 = scmp.eq.s32.totalorder %s123, 0
    %s126 = sadd.s32 %s125, 1
    %s127 = scalar_select %p124, %s125, %s126
    %p130 = pneg %p124
    %p131 = scmp.eq.s32.totalorder %s10, 1
    %p132 = por %p130, %p131
    %p133 = scmp.ne.s32.totalorder %s125, %s128
    %p134 = scmp.eq.s32.totalorder %s10, 0
    %p135 = por %p133, %p134
    %p136 = scmp.ne.s32.totalorder %s125, %s128
    %p137 = scmp.eq.s32.totalorder %s15, 1
    %p138 = por %p136, %p137
    %p139 = scmp.ne.s32.totalorder %s128, %s129
    %p140 = scmp.eq.s32.totalorder %s15, 0
    %p141 = por %p139, %p140
    %p142 = scmp.ne.s32.totalorder %s128, %s129
    %p143 = scmp.eq.s32.totalorder %s16, 1
    %p144 = por %p142, %p143
    %p146 = scmp.ne.s32.totalorder %s129, %s145
    %p147 = scmp.eq.s32.totalorder %s16, 0
    %p148 = por %p146, %p147
    %p149 = scmp.le.s32.totalorder 1, %s10
    %p150 = scmp.lt.s32.totalorder %s10, 3
    %p151 = pnand %p149, %p150
    %p152 = pneg %p151
    // Predicated region
    $region9: #{branch_trunk.1} parent=5 // pred_check
      _
    $region10: #{branch_trunk.1} parent=5 // pred_check_branch
      %154 = sbr.rel (%p151) target = $region12
    $region11: #{branch_trunk.1} parent=5 // pred_region
      %s155 = ssub.s32 %s10, 1
      // Predicated region
      $region13: #{branch_trunk.1} parent=11 // pred_check
        %p156 = pneg %p71
      $region14: #{branch_trunk.1} parent=11 // pred_check_branch
        %158 = sbr.rel (%p156) target = $region16
      $region15: #{branch_trunk.1} parent=11 // pred_region
        _
      $region16: #{branch_trunk.1} parent=11 // pred_fallthru
        _
      // Predicated region
      $region17: #{branch_trunk.1} parent=11 // pred_check
        %p159 = pneg %p92
      $region18: #{branch_trunk.1} parent=11 // pred_check_branch
        %161 = sbr.rel (%p159) target = $region20
      $region19: #{branch_trunk.1} parent=11 // pred_region
        _
      $region20: #{branch_trunk.1} parent=11 // pred_fallthru
        _
      // Predicated region
      $region21: #{branch_trunk.1} parent=11 // pred_check
        %p162 = pneg %p113
      $region22: #{branch_trunk.1} parent=11 // pred_check_branch
        %164 = sbr.rel (%p162) target = $region24
      $region23: #{branch_trunk.1} parent=11 // pred_region
        _
      $region24: #{branch_trunk.1} parent=11 // pred_fallthru
        _
    $region12: #{branch_trunk.1} parent=5 // pred_fallthru
      _
    %p165 = scmp.lt.s32.totalorder %s10, 2
    // Predicated region
    $region25: #{branch_trunk.1} parent=5 // pred_check
      %p166 = pneg %p165
    $region26: #{branch_trunk.1} parent=5 // pred_check_branch
      %168 = sbr.rel (%p166) target = $region28
    $region27: #{branch_trunk.1} parent=5 // pred_region
      // Predicated region
      $region29: #{branch_trunk.1} parent=27 // pred_check
        %p169 = pneg %p44
      $region30: #{branch_trunk.1} parent=27 // pred_check_branch
        %171 = sbr.rel (%p169) target = $region32
      $region31: #{branch_trunk.1} parent=27 // pred_region
        %s172 = smul.u32 128, %s18
        %p173 = scmp.lt.s32.totalorder %s17, 1
        %s174 = scalar_select %p173, %s17, 1
        %p175 = scmp.lt.s32.totalorder %s172, 127
        %s176 = scalar_select %p175, %s172, 127
        %s177 = smul.addr %s174, 128
        %s178 = sadd.s32 %s176, %s177
        %s179 = smul.addr %s178, 8
        %s180 = scalar_lea.vmem %s0, %s179
        %s181 = smul.u32 128, %s18
      $region32: #{branch_trunk.1} parent=27 // pred_fallthru
        _
    $region28: #{branch_trunk.1} parent=5 // pred_fallthru
      _
    %p182 = scmp.le.s32.totalorder 1, %s10
    %p183 = scmp.lt.s32.totalorder %s10, 3
    %p184 = pnand %p182, %p183
    %p185 = pneg %p184
    // Predicated region
    $region33: #{branch_trunk.1} parent=5 // pred_check
      _
    $region34: #{branch_trunk.1} parent=5 // pred_check_branch
      %187 = sbr.rel (%p184) target = $region36
    $region35: #{branch_trunk.1} parent=5 // pred_region
      %s188 = ssub.s32 %s10, 1
      %s189 = smul.u32 128, %s20
      %p190 = scmp.lt.s32.totalorder %s19, 1
      %s191 = scalar_select %p190, %s19, 1
      %p192 = scmp.lt.s32.totalorder %s189, 127
      %s193 = scalar_select %p192, %s189, 127
      %s194 = smul.addr %s191, 128
      %s195 = sadd.s32 %s193, %s194
      %s196 = smul.addr %s195, 8
      %s197 = scalar_lea.vmem %s0, %s196
      %p198 = pneg %p50
      %p199 = pneg %p47
      %p200 = pneg %p71
      %p201 = pneg %p68
      %p202 = pneg %p92
      %p203 = pneg %p89
      %p204 = pneg %p113
      %p205 = pneg %p110
      %p206 = pneg %p141
      %p207 = pneg %p138
      %s208 = smul.u32 128, %s20
      %p209 = scmp.lt.s32.totalorder %s19, 1
      %s210 = scalar_select %p209, %s19, 1
      %p211 = scmp.lt.s32.totalorder %s208, 127
      %s212 = scalar_select %p211, %s208, 127
      %s213 = smul.addr %s210, 512
      %s214 = sadd.s32 %s212, %s213
      %s215 = smul.addr %s214, 8
      %s216 = scalar_lea.vmem %s4, %s215
      %s217 = smul.u32 128, %s20
      %p218 = scmp.lt.s32.totalorder %s19, 1
      %s219 = scalar_select %p218, %s19, 1
      %p220 = scmp.lt.s32.totalorder %s217, 127
      %s221 = scalar_select %p220, %s217, 127
      %s222 = smul.addr %s219, 128
      %s223 = sadd.s32 %s221, %s222
      %s224 = smul.addr %s223, 8
      %s225 = scalar_lea.vmem %s0, %s224
      %s226 = smul.u32 128, %s20
      %s227 = smul.u32 128, %s20
      %p228 = scmp.lt.s32.totalorder %s19, 1
      %s229 = scalar_select %p228, %s19, 1
      %p230 = scmp.lt.s32.totalorder %s227, 127
      %s231 = scalar_select %p230, %s227, 127
      %s232 = smul.addr %s229, 512
      %s233 = sadd.s32 %s231, %s232
      %s234 = smul.addr %s233, 8
      %s235 = scalar_lea.vmem %s4, %s234
      %s236 = smul.u32 128, %s20
      %v237 = vld [vmem:[%s1] sm:$0xf]
      %v238 = vld [vmem:[%s2] sm:$0x1]
      %240 = vset.pattern.permute.xlu0 0
      %241 = vperm.xlu0 %240, %v237
      %v242 = vpop.permute.xlu0 %241
      %v245 = vlaneseq
      %v246 = vshrl.u32 %v245, 7
      %v247 = vsub.s32 0, %v246
      %v248 = vrot.slane %v238, %v247
      %v250 = vmul.f32 %v242, %v248
      %v251 = vld [vmem:[%s3] sm:$0x1]
      %v253 = vlaneseq
      %v254 = vshrl.u32 %v253, 7
      %v255 = vsub.s32 0, %v254
      %v256 = vrot.slane %v251, %v255
      %v258 = vadd.f32 %v250, %v256
      %v259 = vld [vmem:[%s225] sm:$0xff]
      %v260 = vld [vmem:[%s225 + $0x8] sm:$0xff]
      %v261 = vld [vmem:[%s225 + $0x10] sm:$0xff]
      %v262 = vld [vmem:[%s225 + $0x18] sm:$0xff]
      %v263 = vld [vmem:[%s225 + $0x20] sm:$0xff]
      %v264 = vld [vmem:[%s225 + $0x28] sm:$0xff]
      %v265 = vld [vmem:[%s225 + $0x30] sm:$0xff]
      %v266 = vld [vmem:[%s225 + $0x38] sm:$0xff]
      %v267 = vld [vmem:[%s225 + $0x40] sm:$0xff]
      %v268 = vld [vmem:[%s225 + $0x48] sm:$0xff]
      %v269 = vld [vmem:[%s225 + $0x50] sm:$0xff]
      %v270 = vld [vmem:[%s225 + $0x58] sm:$0xff]
      %v271 = vld [vmem:[%s225 + $0x60] sm:$0xff]
      %v272 = vld [vmem:[%s225 + $0x68] sm:$0xff]
      %v273 = vld [vmem:[%s225 + $0x70] sm:$0xff]
      %v274 = vld [vmem:[%s225 + $0x78] sm:$0xff]
      %v275 = vld [vmem:[%s225 + $0x80] sm:$0xff]
      %v276 = vld [vmem:[%s225 + $0x88] sm:$0xff]
      %v277 = vld [vmem:[%s225 + $0x90] sm:$0xff]
      %v278 = vld [vmem:[%s225 + $0x98] sm:$0xff]
      %v279 = vld [vmem:[%s225 + $0xa0] sm:$0xff]
      %v280 = vld [vmem:[%s225 + $0xa8] sm:$0xff]
      %v281 = vld [vmem:[%s225 + $0xb0] sm:$0xff]
      %v282 = vld [vmem:[%s225 + $0xb8] sm:$0xff]
      %v283 = vld [vmem:[%s225 + $0xc0] sm:$0xff]
      %v284 = vld [vmem:[%s225 + $0xc8] sm:$0xff]
      %v285 = vld [vmem:[%s225 + $0xd0] sm:$0xff]
      %v286 = vld [vmem:[%s225 + $0xd8] sm:$0xff]
      %v287 = vld [vmem:[%s225 + $0xe0] sm:$0xff]
      %v288 = vld [vmem:[%s225 + $0xe8] sm:$0xff]
      %v289 = vld [vmem:[%s225 + $0xf0] sm:$0xff]
      %v290 = vld [vmem:[%s225 + $0xf8] sm:$0xff]
      %v291 = vld [vmem:[%s225 + $0x100] sm:$0xff]
      %v292 = vld [vmem:[%s225 + $0x108] sm:$0xff]
      %v293 = vld [vmem:[%s225 + $0x110] sm:$0xff]
      %v294 = vld [vmem:[%s225 + $0x118] sm:$0xff]
      %v295 = vld [vmem:[%s225 + $0x120] sm:$0xff]
      %v296 = vld [vmem:[%s225 + $0x128] sm:$0xff]
      %v297 = vld [vmem:[%s225 + $0x130] sm:$0xff]
      %v298 = vld [vmem:[%s225 + $0x138] sm:$0xff]
      %v299 = vld [vmem:[%s225 + $0x140] sm:$0xff]
      %v300 = vld [vmem:[%s225 + $0x148] sm:$0xff]
      %v301 = vld [vmem:[%s225 + $0x150] sm:$0xff]
      %v302 = vld [vmem:[%s225 + $0x158] sm:$0xff]
      %v303 = vld [vmem:[%s225 + $0x160] sm:$0xff]
      %v304 = vld [vmem:[%s225 + $0x168] sm:$0xff]
      %v305 = vld [vmem:[%s225 + $0x170] sm:$0xff]
      %v306 = vld [vmem:[%s225 + $0x178] sm:$0xff]
      %v307 = vld [vmem:[%s225 + $0x180] sm:$0xff]
      %v308 = vld [vmem:[%s225 + $0x188] sm:$0xff]
      %v309 = vld [vmem:[%s225 + $0x190] sm:$0xff]
      %v310 = vld [vmem:[%s225 + $0x198] sm:$0xff]
      %v311 = vld [vmem:[%s225 + $0x1a0] sm:$0xff]
      %v312 = vld [vmem:[%s225 + $0x1a8] sm:$0xff]
      %v313 = vld [vmem:[%s225 + $0x1b0] sm:$0xff]
      %v314 = vld [vmem:[%s225 + $0x1b8] sm:$0xff]
      %v315 = vld [vmem:[%s225 + $0x1c0] sm:$0xff]
      %v316 = vld [vmem:[%s225 + $0x1c8] sm:$0xff]
      %v317 = vld [vmem:[%s225 + $0x1d0] sm:$0xff]
      %v318 = vld [vmem:[%s225 + $0x1d8] sm:$0xff]
      %v319 = vld [vmem:[%s225 + $0x1e0] sm:$0xff]
      %v320 = vld [vmem:[%s225 + $0x1e8] sm:$0xff]
      %v321 = vld [vmem:[%s225 + $0x1f0] sm:$0xff]
      %v322 = vld [vmem:[%s225 + $0x1f8] sm:$0xff]
      %v323 = vld [vmem:[%s225 + $0x200] sm:$0xff]
      %v324 = vld [vmem:[%s225 + $0x208] sm:$0xff]
      %v325 = vld [vmem:[%s225 + $0x210] sm:$0xff]
      %v326 = vld [vmem:[%s225 + $0x218] sm:$0xff]
      %v327 = vld [vmem:[%s225 + $0x220] sm:$0xff]
      %v328 = vld [vmem:[%s225 + $0x228] sm:$0xff]
      %v329 = vld [vmem:[%s225 + $0x230] sm:$0xff]
      %v330 = vld [vmem:[%s225 + $0x238] sm:$0xff]
      %v331 = vld [vmem:[%s225 + $0x240] sm:$0xff]
      %v332 = vld [vmem:[%s225 + $0x248] sm:$0xff]
      %v333 = vld [vmem:[%s225 + $0x250] sm:$0xff]
      %v334 = vld [vmem:[%s225 + $0x258] sm:$0xff]
      %v335 = vld [vmem:[%s225 + $0x260] sm:$0xff]
      %v336 = vld [vmem:[%s225 + $0x268] sm:$0xff]
      %v337 = vld [vmem:[%s225 + $0x270] sm:$0xff]
      %v338 = vld [vmem:[%s225 + $0x278] sm:$0xff]
      %v339 = vld [vmem:[%s225 + $0x280] sm:$0xff]
      %v340 = vld [vmem:[%s225 + $0x288] sm:$0xff]
      %v341 = vld [vmem:[%s225 + $0x290] sm:$0xff]
      %v342 = vld [vmem:[%s225 + $0x298] sm:$0xff]
      %v343 = vld [vmem:[%s225 + $0x2a0] sm:$0xff]
      %v344 = vld [vmem:[%s225 + $0x2a8] sm:$0xff]
      %v345 = vld [vmem:[%s225 + $0x2b0] sm:$0xff]
      %v346 = vld [vmem:[%s225 + $0x2b8] sm:$0xff]
      %v347 = vld [vmem:[%s225 + $0x2c0] sm:$0xff]
      %v348 = vld [vmem:[%s225 + $0x2c8] sm:$0xff]
      %v349 = vld [vmem:[%s225 + $0x2d0] sm:$0xff]
      %v350 = vld [vmem:[%s225 + $0x2d8] sm:$0xff]
      %v351 = vld [vmem:[%s225 + $0x2e0] sm:$0xff]
      %v352 = vld [vmem:[%s225 + $0x2e8] sm:$0xff]
      %v353 = vld [vmem:[%s225 + $0x2f0] sm:$0xff]
      %v354 = vld [vmem:[%s225 + $0x2f8] sm:$0xff]
      %v355 = vld [vmem:[%s225 + $0x300] sm:$0xff]
      %v356 = vld [vmem:[%s225 + $0x308] sm:$0xff]
      %v357 = vld [vmem:[%s225 + $0x310] sm:$0xff]
      %v358 = vld [vmem:[%s225 + $0x318] sm:$0xff]
      %v359 = vld [vmem:[%s225 + $0x320] sm:$0xff]
      %v360 = vld [vmem:[%s225 + $0x328] sm:$0xff]
      %v361 = vld [vmem:[%s225 + $0x330] sm:$0xff]
      %v362 = vld [vmem:[%s225 + $0x338] sm:$0xff]
      %v363 = vld [vmem:[%s225 + $0x340] sm:$0xff]
      %v364 = vld [vmem:[%s225 + $0x348] sm:$0xff]
      %v365 = vld [vmem:[%s225 + $0x350] sm:$0xff]
      %v366 = vld [vmem:[%s225 + $0x358] sm:$0xff]
      %v367 = vld [vmem:[%s225 + $0x360] sm:$0xff]
      %v368 = vld [vmem:[%s225 + $0x368] sm:$0xff]
      %v369 = vld [vmem:[%s225 + $0x370] sm:$0xff]
      %v370 = vld [vmem:[%s225 + $0x378] sm:$0xff]
      %v371 = vld [vmem:[%s225 + $0x380] sm:$0xff]
      %v372 = vld [vmem:[%s225 + $0x388] sm:$0xff]
      %v373 = vld [vmem:[%s225 + $0x390] sm:$0xff]
      %v374 = vld [vmem:[%s225 + $0x398] sm:$0xff]
      %v375 = vld [vmem:[%s225 + $0x3a0] sm:$0xff]
      %v376 = vld [vmem:[%s225 + $0x3a8] sm:$0xff]
      %v377 = vld [vmem:[%s225 + $0x3b0] sm:$0xff]
      %v378 = vld [vmem:[%s225 + $0x3b8] sm:$0xff]
      %v379 = vld [vmem:[%s225 + $0x3c0] sm:$0xff]
      %v380 = vld [vmem:[%s225 + $0x3c8] sm:$0xff]
      %v381 = vld [vmem:[%s225 + $0x3d0] sm:$0xff]
      %v382 = vld [vmem:[%s225 + $0x3d8] sm:$0xff]
      %v383 = vld [vmem:[%s225 + $0x3e0] sm:$0xff]
      %v384 = vld [vmem:[%s225 + $0x3e8] sm:$0xff]
      %v385 = vld [vmem:[%s225 + $0x3f0] sm:$0xff]
      %v386 = vld [vmem:[%s225 + $0x3f8] sm:$0xff]
      %v389 = vunpack.c.l.s4 1966171168
      %v390 = vunpack.c.0.s8 %v389
      %v391 = vlaneseq
      %v392 = vshrl.u32 %v391, 7
      %v393 = vsub.s32 %v390, %v392
      %v394 = vrot.slane %v258, %v393
      %v395 = vcombine.high %v394, %v394
      %v397 = vunpack.c.l.s4 1966171168
      %v398 = vunpack.c.0.s8 %v397
      %v399 = vlaneseq
      %v400 = vshrl.u32 %v399, 7
      %v401 = vsub.s32 %v398, %v400
      %v402 = vrot.slane %v394, %v401
      %v404 = vunpack.c.l.s4 1966171168
      %v405 = vunpack.c.0.s8 %v404
      %v406 = vlaneseq
      %v407 = vshrl.u32 %v406, 7
      %v408 = vsub.s32 %v405, %v407
      %v409 = vrot.slane %v395, %v408
      %v410 = vcombine.high %v402, %v402
      %v411 = vcombine.high %v409, %v409
      %v412 = vlaneseq
      %v413 = vshrl.u32 %v412, 7
      %v414 = vsub.s32 0, %v413
      %v415 = vrot.slane %v402, %v414
      %v416 = vlaneseq
      %v417 = vshrl.u32 %v416, 7
      %v418 = vsub.s32 0, %v417
      %v419 = vrot.slane %v409, %v418
      %v420 = vlaneseq
      %v421 = vshrl.u32 %v420, 7
      %v422 = vsub.s32 0, %v421
      %v423 = vrot.slane %v410, %v422
      %v424 = vlaneseq
      %v425 = vshrl.u32 %v424, 7
      %v426 = vsub.s32 0, %v425
      %v427 = vrot.slane %v411, %v426
      %v432 = vmul.f32 %v415, %v259
      %v433 = vmul.f32 %v415, %v260
      %v434 = vmul.f32 %v415, %v261
      %v435 = vmul.f32 %v415, %v262
      %v436 = vmul.f32 %v415, %v263
      %v437 = vmul.f32 %v415, %v264
      %v438 = vmul.f32 %v415, %v265
      %v439 = vmul.f32 %v415, %v266
      %v440 = vmul.f32 %v415, %v267
      %v441 = vmul.f32 %v415, %v268
      %v442 = vmul.f32 %v415, %v269
      %v443 = vmul.f32 %v415, %v270
      %v444 = vmul.f32 %v415, %v271
      %v445 = vmul.f32 %v415, %v272
      %v446 = vmul.f32 %v415, %v273
      %v447 = vmul.f32 %v415, %v274
      %v448 = vmul.f32 %v415, %v275
      %v449 = vmul.f32 %v415, %v276
      %v450 = vmul.f32 %v415, %v277
      %v451 = vmul.f32 %v415, %v278
      %v452 = vmul.f32 %v415, %v279
      %v453 = vmul.f32 %v415, %v280
      %v454 = vmul.f32 %v415, %v281
      %v455 = vmul.f32 %v415, %v282
      %v456 = vmul.f32 %v415, %v283
      %v457 = vmul.f32 %v415, %v284
      %v458 = vmul.f32 %v415, %v285
      %v459 = vmul.f32 %v415, %v286
      %v460 = vmul.f32 %v415, %v287
      %v461 = vmul.f32 %v415, %v288
      %v462 = vmul.f32 %v415, %v289
      %v463 = vmul.f32 %v415, %v290
      %v464 = vmul.f32 %v415, %v291
      %v465 = vmul.f32 %v415, %v292
      %v466 = vmul.f32 %v415, %v293
      %v467 = vmul.f32 %v415, %v294
      %v468 = vmul.f32 %v415, %v295
      %v469 = vmul.f32 %v415, %v296
      %v470 = vmul.f32 %v415, %v297
      %v471 = vmul.f32 %v415, %v298
      %v472 = vmul.f32 %v415, %v299
      %v473 = vmul.f32 %v415, %v300
      %v474 = vmul.f32 %v415, %v301
      %v475 = vmul.f32 %v415, %v302
      %v476 = vmul.f32 %v415, %v303
      %v477 = vmul.f32 %v415, %v304
      %v478 = vmul.f32 %v415, %v305
      %v479 = vmul.f32 %v415, %v306
      %v480 = vmul.f32 %v415, %v307
      %v481 = vmul.f32 %v415, %v308
      %v482 = vmul.f32 %v415, %v309
      %v483 = vmul.f32 %v415, %v310
      %v484 = vmul.f32 %v415, %v311
      %v485 = vmul.f32 %v415, %v312
      %v486 = vmul.f32 %v415, %v313
      %v487 = vmul.f32 %v415, %v314
      %v488 = vmul.f32 %v415, %v315
      %v489 = vmul.f32 %v415, %v316
      %v490 = vmul.f32 %v415, %v317
      %v491 = vmul.f32 %v415, %v318
      %v492 = vmul.f32 %v415, %v319
      %v493 = vmul.f32 %v415, %v320
      %v494 = vmul.f32 %v415, %v321
      %v495 = vmul.f32 %v415, %v322
      %v496 = vmul.f32 %v415, %v323
      %v497 = vmul.f32 %v415, %v324
      %v498 = vmul.f32 %v415, %v325
      %v499 = vmul.f32 %v415, %v326
      %v500 = vmul.f32 %v415, %v327
      %v501 = vmul.f32 %v415, %v328
      %v502 = vmul.f32 %v415, %v329
      %v503 = vmul.f32 %v415, %v330
      %v504 = vmul.f32 %v415, %v331
      %v505 = vmul.f32 %v415, %v332
      %v506 = vmul.f32 %v415, %v333
      %v507 = vmul.f32 %v415, %v334
      %v508 = vmul.f32 %v415, %v335
      %v509 = vmul.f32 %v415, %v336
      %v510 = vmul.f32 %v415, %v337
      %v511 = vmul.f32 %v415, %v338
      %v512 = vmul.f32 %v415, %v339
      %v513 = vmul.f32 %v415, %v340
      %v514 = vmul.f32 %v415, %v341
      %v515 = vmul.f32 %v415, %v342
      %v516 = vmul.f32 %v415, %v343
      %v517 = vmul.f32 %v415, %v344
      %v518 = vmul.f32 %v415, %v345
      %v519 = vmul.f32 %v415, %v346
      %v520 = vmul.f32 %v415, %v347
      %v521 = vmul.f32 %v415, %v348
      %v522 = vmul.f32 %v415, %v349
      %v523 = vmul.f32 %v415, %v350
      %v524 = vmul.f32 %v415, %v351
      %v525 = vmul.f32 %v415, %v352
      %v526 = vmul.f32 %v415, %v353
      %v527 = vmul.f32 %v415, %v354
      %v528 = vmul.f32 %v415, %v355
      %v529 = vmul.f32 %v415, %v356
      %v530 = vmul.f32 %v415, %v357
      %v531 = vmul.f32 %v415, %v358
      %v532 = vmul.f32 %v415, %v359
      %v533 = vmul.f32 %v415, %v360
      %v534 = vmul.f32 %v415, %v361
      %v535 = vmul.f32 %v415, %v362
      %v536 = vmul.f32 %v415, %v363
      %v537 = vmul.f32 %v415, %v364
      %v538 = vmul.f32 %v415, %v365
      %v539 = vmul.f32 %v415, %v366
      %v540 = vmul.f32 %v415, %v367
      %v541 = vmul.f32 %v415, %v368
      %v542 = vmul.f32 %v415, %v369
      %v543 = vmul.f32 %v415, %v370
      %v544 = vmul.f32 %v415, %v371
      %v545 = vmul.f32 %v415, %v372
      %v546 = vmul.f32 %v415, %v373
      %v547 = vmul.f32 %v415, %v374
      %v548 = vmul.f32 %v415, %v375
      %v549 = vmul.f32 %v415, %v376
      %v550 = vmul.f32 %v415, %v377
      %v551 = vmul.f32 %v415, %v378
      %v552 = vmul.f32 %v415, %v379
      %v553 = vmul.f32 %v415, %v380
      %v554 = vmul.f32 %v415, %v381
      %v555 = vmul.f32 %v415, %v382
      %v556 = vmul.f32 %v415, %v383
      %v557 = vmul.f32 %v415, %v384
      %v558 = vmul.f32 %v415, %v385
      %v559 = vmul.f32 %v415, %v386
      %v560 = vmul.f32 %v419, %v259
      %v561 = vmul.f32 %v419, %v260
      %v562 = vmul.f32 %v419, %v261
      %v563 = vmul.f32 %v419, %v262
      %v564 = vmul.f32 %v419, %v263
      %v565 = vmul.f32 %v419, %v264
      %v566 = vmul.f32 %v419, %v265
      %v567 = vmul.f32 %v419, %v266
      %v568 = vmul.f32 %v419, %v267
      %v569 = vmul.f32 %v419, %v268
      %v570 = vmul.f32 %v419, %v269
      %v571 = vmul.f32 %v419, %v270
      %v572 = vmul.f32 %v419, %v271
      %v573 = vmul.f32 %v419, %v272
      %v574 = vmul.f32 %v419, %v273
      %v575 = vmul.f32 %v419, %v274
      %v576 = vmul.f32 %v419, %v275
      %v577 = vmul.f32 %v419, %v276
      %v578 = vmul.f32 %v419, %v277
      %v579 = vmul.f32 %v419, %v278
      %v580 = vmul.f32 %v419, %v279
      %v581 = vmul.f32 %v419, %v280
      %v582 = vmul.f32 %v419, %v281
      %v583 = vmul.f32 %v419, %v282
      %v584 = vmul.f32 %v419, %v283
      %v585 = vmul.f32 %v419, %v284
      %v586 = vmul.f32 %v419, %v285
      %v587 = vmul.f32 %v419, %v286
      %v588 = vmul.f32 %v419, %v287
      %v589 = vmul.f32 %v419, %v288
      %v590 = vmul.f32 %v419, %v289
      %v591 = vmul.f32 %v419, %v290
      %v592 = vmul.f32 %v419, %v291
      %v593 = vmul.f32 %v419, %v292
      %v594 = vmul.f32 %v419, %v293
      %v595 = vmul.f32 %v419, %v294
      %v596 = vmul.f32 %v419, %v295
      %v597 = vmul.f32 %v419, %v296
      %v598 = vmul.f32 %v419, %v297
      %v599 = vmul.f32 %v419, %v298
      %v600 = vmul.f32 %v419, %v299
      %v601 = vmul.f32 %v419, %v300
      %v602 = vmul.f32 %v419, %v301
      %v603 = vmul.f32 %v419, %v302
      %v604 = vmul.f32 %v419, %v303
      %v605 = vmul.f32 %v419, %v304
      %v606 = vmul.f32 %v419, %v305
      %v607 = vmul.f32 %v419, %v306
      %v608 = vmul.f32 %v419, %v307
      %v609 = vmul.f32 %v419, %v308
      %v610 = vmul.f32 %v419, %v309
      %v611 = vmul.f32 %v419, %v310
      %v612 = vmul.f32 %v419, %v311
      %v613 = vmul.f32 %v419, %v312
      %v614 = vmul.f32 %v419, %v313
      %v615 = vmul.f32 %v419, %v314
      %v616 = vmul.f32 %v419, %v315
      %v617 = vmul.f32 %v419, %v316
      %v618 = vmul.f32 %v419, %v317
      %v619 = vmul.f32 %v419, %v318
      %v620 = vmul.f32 %v419, %v319
      %v621 = vmul.f32 %v419, %v320
      %v622 = vmul.f32 %v419, %v321
      %v623 = vmul.f32 %v419, %v322
      %v624 = vmul.f32 %v419, %v323
      %v625 = vmul.f32 %v419, %v324
      %v626 = vmul.f32 %v419, %v325
      %v627 = vmul.f32 %v419, %v326
      %v628 = vmul.f32 %v419, %v327
      %v629 = vmul.f32 %v419, %v328
      %v630 = vmul.f32 %v419, %v329
      %v631 = vmul.f32 %v419, %v330
      %v632 = vmul.f32 %v419, %v331
      %v633 = vmul.f32 %v419, %v332
      %v634 = vmul.f32 %v419, %v333
      %v635 = vmul.f32 %v419, %v334
      %v636 = vmul.f32 %v419, %v335
      %v637 = vmul.f32 %v419, %v336
      %v638 = vmul.f32 %v419, %v337
      %v639 = vmul.f32 %v419, %v338
      %v640 = vmul.f32 %v419, %v339
      %v641 = vmul.f32 %v419, %v340
      %v642 = vmul.f32 %v419, %v341
      %v643 = vmul.f32 %v419, %v342
      %v644 = vmul.f32 %v419, %v343
      %v645 = vmul.f32 %v419, %v344
      %v646 = vmul.f32 %v419, %v345
      %v647 = vmul.f32 %v419, %v346
      %v648 = vmul.f32 %v419, %v347
      %v649 = vmul.f32 %v419, %v348
      %v650 = vmul.f32 %v419, %v349
      %v651 = vmul.f32 %v419, %v350
      %v652 = vmul.f32 %v419, %v351
      %v653 = vmul.f32 %v419, %v352
      %v654 = vmul.f32 %v419, %v353
      %v655 = vmul.f32 %v419, %v354
      %v656 = vmul.f32 %v419, %v355
      %v657 = vmul.f32 %v419, %v356
      %v658 = vmul.f32 %v419, %v357
      %v659 = vmul.f32 %v419, %v358
      %v660 = vmul.f32 %v419, %v359
      %v661 = vmul.f32 %v419, %v360
      %v662 = vmul.f32 %v419, %v361
      %v663 = vmul.f32 %v419, %v362
      %v664 = vmul.f32 %v419, %v363
      %v665 = vmul.f32 %v419, %v364
      %v666 = vmul.f32 %v419, %v365
      %v667 = vmul.f32 %v419, %v366
      %v668 = vmul.f32 %v419, %v367
      %v669 = vmul.f32 %v419, %v368
      %v670 = vmul.f32 %v419, %v369
      %v671 = vmul.f32 %v419, %v370
      %v672 = vmul.f32 %v419, %v371
      %v673 = vmul.f32 %v419, %v372
      %v674 = vmul.f32 %v419, %v373
      %v675 = vmul.f32 %v419, %v374
      %v676 = vmul.f32 %v419, %v375
      %v677 = vmul.f32 %v419, %v376
      %v678 = vmul.f32 %v419, %v377
      %v679 = vmul.f32 %v419, %v378
      %v680 = vmul.f32 %v419, %v379
      %v681 = vmul.f32 %v419, %v380
      %v682 = vmul.f32 %v419, %v381
      %v683 = vmul.f32 %v419, %v382
      %v684 = vmul.f32 %v419, %v383
      %v685 = vmul.f32 %v419, %v384
      %v686 = vmul.f32 %v419, %v385
      %v687 = vmul.f32 %v419, %v386
      %v688 = vmul.f32 %v423, %v259
      %v689 = vmul.f32 %v423, %v260
      %v690 = vmul.f32 %v423, %v261
      %v691 = vmul.f32 %v423, %v262
      %v692 = vmul.f32 %v423, %v263
      %v693 = vmul.f32 %v423, %v264
      %v694 = vmul.f32 %v423, %v265
      %v695 = vmul.f32 %v423, %v266
      %v696 = vmul.f32 %v423, %v267
      %v697 = vmul.f32 %v423, %v268
      %v698 = vmul.f32 %v423, %v269
      %v699 = vmul.f32 %v423, %v270
      %v700 = vmul.f32 %v423, %v271
      %v701 = vmul.f32 %v423, %v272
      %v702 = vmul.f32 %v423, %v273
      %v703 = vmul.f32 %v423, %v274
      %v704 = vmul.f32 %v423, %v275
      %v705 = vmul.f32 %v423, %v276
      %v706 = vmul.f32 %v423, %v277
      %v707 = vmul.f32 %v423, %v278
      %v708 = vmul.f32 %v423, %v279
      %v709 = vmul.f32 %v423, %v280
      %v710 = vmul.f32 %v423, %v281
      %v711 = vmul.f32 %v423, %v282
      %v712 = vmul.f32 %v423, %v283
      %v713 = vmul.f32 %v423, %v284
      %v714 = vmul.f32 %v423, %v285
      %v715 = vmul.f32 %v423, %v286
      %v716 = vmul.f32 %v423, %v287
      %v717 = vmul.f32 %v423, %v288
      %v718 = vmul.f32 %v423, %v289
      %v719 = vmul.f32 %v423, %v290
      %v720 = vmul.f32 %v423, %v291
      %v721 = vmul.f32 %v423, %v292
      %v722 = vmul.f32 %v423, %v293
      %v723 = vmul.f32 %v423, %v294
      %v724 = vmul.f32 %v423, %v295
      %v725 = vmul.f32 %v423, %v296
      %v726 = vmul.f32 %v423, %v297
      %v727 = vmul.f32 %v423, %v298
      %v728 = vmul.f32 %v423, %v299
      %v729 = vmul.f32 %v423, %v300
      %v730 = vmul.f32 %v423, %v301
      %v731 = vmul.f32 %v423, %v302
      %v732 = vmul.f32 %v423, %v303
      %v733 = vmul.f32 %v423, %v304
      %v734 = vmul.f32 %v423, %v305
      %v735 = vmul.f32 %v423, %v306
      %v736 = vmul.f32 %v423, %v307
      %v737 = vmul.f32 %v423, %v308
      %v738 = vmul.f32 %v423, %v309
      %v739 = vmul.f32 %v423, %v310
      %v740 = vmul.f32 %v423, %v311
      %v741 = vmul.f32 %v423, %v312
      %v742 = vmul.f32 %v423, %v313
      %v743 = vmul.f32 %v423, %v314
      %v744 = vmul.f32 %v423, %v315
      %v745 = vmul.f32 %v423, %v316
      %v746 = vmul.f32 %v423, %v317
      %v747 = vmul.f32 %v423, %v318
      %v748 = vmul.f32 %v423, %v319
      %v749 = vmul.f32 %v423, %v320
      %v750 = vmul.f32 %v423, %v321
      %v751 = vmul.f32 %v423, %v322
      %v752 = vmul.f32 %v423, %v323
      %v753 = vmul.f32 %v423, %v324
      %v754 = vmul.f32 %v423, %v325
      %v755 = vmul.f32 %v423, %v326
      %v756 = vmul.f32 %v423, %v327
      %v757 = vmul.f32 %v423, %v328
      %v758 = vmul.f32 %v423, %v329
      %v759 = vmul.f32 %v423, %v330
      %v760 = vmul.f32 %v423, %v331
      %v761 = vmul.f32 %v423, %v332
      %v762 = vmul.f32 %v423, %v333
      %v763 = vmul.f32 %v423, %v334
      %v764 = vmul.f32 %v423, %v335
      %v765 = vmul.f32 %v423, %v336
      %v766 = vmul.f32 %v423, %v337
      %v767 = vmul.f32 %v423, %v338
      %v768 = vmul.f32 %v423, %v339
      %v769 = vmul.f32 %v423, %v340
      %v770 = vmul.f32 %v423, %v341
      %v771 = vmul.f32 %v423, %v342
      %v772 = vmul.f32 %v423, %v343
      %v773 = vmul.f32 %v423, %v344
      %v774 = vmul.f32 %v423, %v345
      %v775 = vmul.f32 %v423, %v346
      %v776 = vmul.f32 %v423, %v347
      %v777 = vmul.f32 %v423, %v348
      %v778 = vmul.f32 %v423, %v349
      %v779 = vmul.f32 %v423, %v350
      %v780 = vmul.f32 %v423, %v351
      %v781 = vmul.f32 %v423, %v352
      %v782 = vmul.f32 %v423, %v353
      %v783 = vmul.f32 %v423, %v354
      %v784 = vmul.f32 %v423, %v355
      %v785 = vmul.f32 %v423, %v356
      %v786 = vmul.f32 %v423, %v357
      %v787 = vmul.f32 %v423, %v358
      %v788 = vmul.f32 %v423, %v359
      %v789 = vmul.f32 %v423, %v360
      %v790 = vmul.f32 %v423, %v361
      %v791 = vmul.f32 %v423, %v362
      %v792 = vmul.f32 %v423, %v363
      %v793 = vmul.f32 %v423, %v364
      %v794 = vmul.f32 %v423, %v365
      %v795 = vmul.f32 %v423, %v366
      %v796 = vmul.f32 %v423, %v367
      %v797 = vmul.f32 %v423, %v368
      %v798 = vmul.f32 %v423, %v369
      %v799 = vmul.f32 %v423, %v370
      %v800 = vmul.f32 %v423, %v371
      %v801 = vmul.f32 %v423, %v372
      %v802 = vmul.f32 %v423, %v373
      %v803 = vmul.f32 %v423, %v374
      %v804 = vmul.f32 %v423, %v375
      %v805 = vmul.f32 %v423, %v376
      %v806 = vmul.f32 %v423, %v377
      %v807 = vmul.f32 %v423, %v378
      %v808 = vmul.f32 %v423, %v379
      %v809 = vmul.f32 %v423, %v380
      %v810 = vmul.f32 %v423, %v381
      %v811 = vmul.f32 %v423, %v382
      %v812 = vmul.f32 %v423, %v383
      %v813 = vmul.f32 %v423, %v384
      %v814 = vmul.f32 %v423, %v385
      %v815 = vmul.f32 %v423, %v386
      %v816 = vmul.f32 %v427, %v259
      %v817 = vmul.f32 %v427, %v260
      %v818 = vmul.f32 %v427, %v261
      %v819 = vmul.f32 %v427, %v262
      %v820 = vmul.f32 %v427, %v263
      %v821 = vmul.f32 %v427, %v264
      %v822 = vmul.f32 %v427, %v265
      %v823 = vmul.f32 %v427, %v266
      %v824 = vmul.f32 %v427, %v267
      %v825 = vmul.f32 %v427, %v268
      %v826 = vmul.f32 %v427, %v269
      %v827 = vmul.f32 %v427, %v270
      %v828 = vmul.f32 %v427, %v271
      %v829 = vmul.f32 %v427, %v272
      %v830 = vmul.f32 %v427, %v273
      %v831 = vmul.f32 %v427, %v274
      %v832 = vmul.f32 %v427, %v275
      %v833 = vmul.f32 %v427, %v276
      %v834 = vmul.f32 %v427, %v277
      %v835 = vmul.f32 %v427, %v278
      %v836 = vmul.f32 %v427, %v279
      %v837 = vmul.f32 %v427, %v280
      %v838 = vmul.f32 %v427, %v281
      %v839 = vmul.f32 %v427, %v282
      %v840 = vmul.f32 %v427, %v283
      %v841 = vmul.f32 %v427, %v284
      %v842 = vmul.f32 %v427, %v285
      %v843 = vmul.f32 %v427, %v286
      %v844 = vmul.f32 %v427, %v287
      %v845 = vmul.f32 %v427, %v288
      %v846 = vmul.f32 %v427, %v289
      %v847 = vmul.f32 %v427, %v290
      %v848 = vmul.f32 %v427, %v291
      %v849 = vmul.f32 %v427, %v292
      %v850 = vmul.f32 %v427, %v293
      %v851 = vmul.f32 %v427, %v294
      %v852 = vmul.f32 %v427, %v295
      %v853 = vmul.f32 %v427, %v296
      %v854 = vmul.f32 %v427, %v297
      %v855 = vmul.f32 %v427, %v298
      %v856 = vmul.f32 %v427, %v299
      %v857 = vmul.f32 %v427, %v300
      %v858 = vmul.f32 %v427, %v301
      %v859 = vmul.f32 %v427, %v302
      %v860 = vmul.f32 %v427, %v303
      %v861 = vmul.f32 %v427, %v304
      %v862 = vmul.f32 %v427, %v305
      %v863 = vmul.f32 %v427, %v306
      %v864 = vmul.f32 %v427, %v307
      %v865 = vmul.f32 %v427, %v308
      %v866 = vmul.f32 %v427, %v309
      %v867 = vmul.f32 %v427, %v310
      %v868 = vmul.f32 %v427, %v311
      %v869 = vmul.f32 %v427, %v312
      %v870 = vmul.f32 %v427, %v313
      %v871 = vmul.f32 %v427, %v314
      %v872 = vmul.f32 %v427, %v315
      %v873 = vmul.f32 %v427, %v316
      %v874 = vmul.f32 %v427, %v317
      %v875 = vmul.f32 %v427, %v318
      %v876 = vmul.f32 %v427, %v319
      %v877 = vmul.f32 %v427, %v320
      %v878 = vmul.f32 %v427, %v321
      %v879 = vmul.f32 %v427, %v322
      %v880 = vmul.f32 %v427, %v323
      %v881 = vmul.f32 %v427, %v324
      %v882 = vmul.f32 %v427, %v325
      %v883 = vmul.f32 %v427, %v326
      %v884 = vmul.f32 %v427, %v327
      %v885 = vmul.f32 %v427, %v328
      %v886 = vmul.f32 %v427, %v329
      %v887 = vmul.f32 %v427, %v330
      %v888 = vmul.f32 %v427, %v331
      %v889 = vmul.f32 %v427, %v332
      %v890 = vmul.f32 %v427, %v333
      %v891 = vmul.f32 %v427, %v334
      %v892 = vmul.f32 %v427, %v335
      %v893 = vmul.f32 %v427, %v336
      %v894 = vmul.f32 %v427, %v337
      %v895 = vmul.f32 %v427, %v338
      %v896 = vmul.f32 %v427, %v339
      %v897 = vmul.f32 %v427, %v340
      %v898 = vmul.f32 %v427, %v341
      %v899 = vmul.f32 %v427, %v342
      %v900 = vmul.f32 %v427, %v343
      %v901 = vmul.f32 %v427, %v344
      %v902 = vmul.f32 %v427, %v345
      %v903 = vmul.f32 %v427, %v346
      %v904 = vmul.f32 %v427, %v347
      %v905 = vmul.f32 %v427, %v348
      %v906 = vmul.f32 %v427, %v349
      %v907 = vmul.f32 %v427, %v350
      %v908 = vmul.f32 %v427, %v351
      %v909 = vmul.f32 %v427, %v352
      %v910 = vmul.f32 %v427, %v353
      %v911 = vmul.f32 %v427, %v354
      %v912 = vmul.f32 %v427, %v355
      %v913 = vmul.f32 %v427, %v356
      %v914 = vmul.f32 %v427, %v357
      %v915 = vmul.f32 %v427, %v358
      %v916 = vmul.f32 %v427, %v359
      %v917 = vmul.f32 %v427, %v360
      %v918 = vmul.f32 %v427, %v361
      %v919 = vmul.f32 %v427, %v362
      %v920 = vmul.f32 %v427, %v363
      %v921 = vmul.f32 %v427, %v364
      %v922 = vmul.f32 %v427, %v365
      %v923 = vmul.f32 %v427, %v366
      %v924 = vmul.f32 %v427, %v367
      %v925 = vmul.f32 %v427, %v368
      %v926 = vmul.f32 %v427, %v369
      %v927 = vmul.f32 %v427, %v370
      %v928 = vmul.f32 %v427, %v371
      %v929 = vmul.f32 %v427, %v372
      %v930 = vmul.f32 %v427, %v373
      %v931 = vmul.f32 %v427, %v374
      %v932 = vmul.f32 %v427, %v375
      %v933 = vmul.f32 %v427, %v376
      %v934 = vmul.f32 %v427, %v377
      %v935 = vmul.f32 %v427, %v378
      %v936 = vmul.f32 %v427, %v379
      %v937 = vmul.f32 %v427, %v380
      %v938 = vmul.f32 %v427, %v381
      %v939 = vmul.f32 %v427, %v382
      %v940 = vmul.f32 %v427, %v383
      %v941 = vmul.f32 %v427, %v384
      %v942 = vmul.f32 %v427, %v385
      %v943 = vmul.f32 %v427, %v386
      %944 = vst [vmem:[%s235] sm:$0xff] %v432
      %945 = vst [vmem:[%s235 + $0x8] sm:$0xff] %v433
      %946 = vst [vmem:[%s235 + $0x10] sm:$0xff] %v434
      %947 = vst [vmem:[%s235 + $0x18] sm:$0xff] %v435
      %948 = vst [vmem:[%s235 + $0x20] sm:$0xff] %v436
      %949 = vst [vmem:[%s235 + $0x28] sm:$0xff] %v437
      %950 = vst [vmem:[%s235 + $0x30] sm:$0xff] %v438
      %951 = vst [vmem:[%s235 + $0x38] sm:$0xff] %v439
      %952 = vst [vmem:[%s235 + $0x40] sm:$0xff] %v440
      %953 = vst [vmem:[%s235 + $0x48] sm:$0xff] %v441
      %954 = vst [vmem:[%s235 + $0x50] sm:$0xff] %v442
      %955 = vst [vmem:[%s235 + $0x58] sm:$0xff] %v443
      %956 = vst [vmem:[%s235 + $0x60] sm:$0xff] %v444
      %957 = vst [vmem:[%s235 + $0x68] sm:$0xff] %v445
      %958 = vst [vmem:[%s235 + $0x70] sm:$0xff] %v446
      %959 = vst [vmem:[%s235 + $0x78] sm:$0xff] %v447
      %960 = vst [vmem:[%s235 + $0x80] sm:$0xff] %v448
      %961 = vst [vmem:[%s235 + $0x88] sm:$0xff] %v449
      %962 = vst [vmem:[%s235 + $0x90] sm:$0xff] %v450
      %963 = vst [vmem:[%s235 + $0x98] sm:$0xff] %v451
      %964 = vst [vmem:[%s235 + $0xa0] sm:$0xff] %v452
      %965 = vst [vmem:[%s235 + $0xa8] sm:$0xff] %v453
      %966 = vst [vmem:[%s235 + $0xb0] sm:$0xff] %v454
      %967 = vst [vmem:[%s235 + $0xb8] sm:$0xff] %v455
      %968 = vst [vmem:[%s235 + $0xc0] sm:$0xff] %v456
      %969 = vst [vmem:[%s235 + $0xc8] sm:$0xff] %v457
      %970 = vst [vmem:[%s235 + $0xd0] sm:$0xff] %v458
      %971 = vst [vmem:[%s235 + $0xd8] sm:$0xff] %v459
      %972 = vst [vmem:[%s235 + $0xe0] sm:$0xff] %v460
      %973 = vst [vmem:[%s235 + $0xe8] sm:$0xff] %v461
      %974 = vst [vmem:[%s235 + $0xf0] sm:$0xff] %v462
      %975 = vst [vmem:[%s235 + $0xf8] sm:$0xff] %v463
      %976 = vst [vmem:[%s235 + $0x100] sm:$0xff] %v464
      %977 = vst [vmem:[%s235 + $0x108] sm:$0xff] %v465
      %978 = vst [vmem:[%s235 + $0x110] sm:$0xff] %v466
      %979 = vst [vmem:[%s235 + $0x118] sm:$0xff] %v467
      %980 = vst [vmem:[%s235 + $0x120] sm:$0xff] %v468
      %981 = vst [vmem:[%s235 + $0x128] sm:$0xff] %v469
      %982 = vst [vmem:[%s235 + $0x130] sm:$0xff] %v470
      %983 = vst [vmem:[%s235 + $0x138] sm:$0xff] %v471
      %984 = vst [vmem:[%s235 + $0x140] sm:$0xff] %v472
      %985 = vst [vmem:[%s235 + $0x148] sm:$0xff] %v473
      %986 = vst [vmem:[%s235 + $0x150] sm:$0xff] %v474
      %987 = vst [vmem:[%s235 + $0x158] sm:$0xff] %v475
      %988 = vst [vmem:[%s235 + $0x160] sm:$0xff] %v476
      %989 = vst [vmem:[%s235 + $0x168] sm:$0xff] %v477
      %990 = vst [vmem:[%s235 + $0x170] sm:$0xff] %v478
      %991 = vst [vmem:[%s235 + $0x178] sm:$0xff] %v479
      %992 = vst [vmem:[%s235 + $0x180] sm:$0xff] %v480
      %993 = vst [vmem:[%s235 + $0x188] sm:$0xff] %v481
      %994 = vst [vmem:[%s235 + $0x190] sm:$0xff] %v482
      %995 = vst [vmem:[%s235 + $0x198] sm:$0xff] %v483
      %996 = vst [vmem:[%s235 + $0x1a0] sm:$0xff] %v484
      %997 = vst [vmem:[%s235 + $0x1a8] sm:$0xff] %v485
      %998 = vst [vmem:[%s235 + $0x1b0] sm:$0xff] %v486
      %999 = vst [vmem:[%s235 + $0x1b8] sm:$0xff] %v487
      %1000 = vst [vmem:[%s235 + $0x1c0] sm:$0xff] %v488
      %1001 = vst [vmem:[%s235 + $0x1c8] sm:$0xff] %v489
      %1002 = vst [vmem:[%s235 + $0x1d0] sm:$0xff] %v490
      %1003 = vst [vmem:[%s235 + $0x1d8] sm:$0xff] %v491
      %1004 = vst [vmem:[%s235 + $0x1e0] sm:$0xff] %v492
      %1005 = vst [vmem:[%s235 + $0x1e8] sm:$0xff] %v493
      %1006 = vst [vmem:[%s235 + $0x1f0] sm:$0xff] %v494
      %1007 = vst [vmem:[%s235 + $0x1f8] sm:$0xff] %v495
      %1008 = vst [vmem:[%s235 + $0x200] sm:$0xff] %v496
      %1009 = vst [vmem:[%s235 + $0x208] sm:$0xff] %v497
      %1010 = vst [vmem:[%s235 + $0x210] sm:$0xff] %v498
      %1011 = vst [vmem:[%s235 + $0x218] sm:$0xff] %v499
      %1012 = vst [vmem:[%s235 + $0x220] sm:$0xff] %v500
      %1013 = vst [vmem:[%s235 + $0x228] sm:$0xff] %v501
      %1014 = vst [vmem:[%s235 + $0x230] sm:$0xff] %v502
      %1015 = vst [vmem:[%s235 + $0x238] sm:$0xff] %v503
      %1016 = vst [vmem:[%s235 + $0x240] sm:$0xff] %v504
      %1017 = vst [vmem:[%s235 + $0x248] sm:$0xff] %v505
      %1018 = vst [vmem:[%s235 + $0x250] sm:$0xff] %v506
      %1019 = vst [vmem:[%s235 + $0x258] sm:$0xff] %v507
      %1020 = vst [vmem:[%s235 + $0x260] sm:$0xff] %v508
      %1021 = vst [vmem:[%s235 + $0x268] sm:$0xff] %v509
      %1022 = vst [vmem:[%s235 + $0x270] sm:$0xff] %v510
      %1023 = vst [vmem:[%s235 + $0x278] sm:$0xff] %v511
      %1024 = vst [vmem:[%s235 + $0x280] sm:$0xff] %v512
      %1025 = vst [vmem:[%s235 + $0x288] sm:$0xff] %v513
      %1026 = vst [vmem:[%s235 + $0x290] sm:$0xff] %v514
      %1027 = vst [vmem:[%s235 + $0x298] sm:$0xff] %v515
      %1028 = vst [vmem:[%s235 + $0x2a0] sm:$0xff] %v516
      %1029 = vst [vmem:[%s235 + $0x2a8] sm:$0xff] %v517
      %1030 = vst [vmem:[%s235 + $0x2b0] sm:$0xff] %v518
      %1031 = vst [vmem:[%s235 + $0x2b8] sm:$0xff] %v519
      %1032 = vst [vmem:[%s235 + $0x2c0] sm:$0xff] %v520
      %1033 = vst [vmem:[%s235 + $0x2c8] sm:$0xff] %v521
      %1034 = vst [vmem:[%s235 + $0x2d0] sm:$0xff] %v522
      %1035 = vst [vmem:[%s235 + $0x2d8] sm:$0xff] %v523
      %1036 = vst [vmem:[%s235 + $0x2e0] sm:$0xff] %v524
      %1037 = vst [vmem:[%s235 + $0x2e8] sm:$0xff] %v525
      %1038 = vst [vmem:[%s235 + $0x2f0] sm:$0xff] %v526
      %1039 = vst [vmem:[%s235 + $0x2f8] sm:$0xff] %v527
      %1040 = vst [vmem:[%s235 + $0x300] sm:$0xff] %v528
      %1041 = vst [vmem:[%s235 + $0x308] sm:$0xff] %v529
      %1042 = vst [vmem:[%s235 + $0x310] sm:$0xff] %v530
      %1043 = vst [vmem:[%s235 + $0x318] sm:$0xff] %v531
      %1044 = vst [vmem:[%s235 + $0x320] sm:$0xff] %v532
      %1045 = vst [vmem:[%s235 + $0x328] sm:$0xff] %v533
      %1046 = vst [vmem:[%s235 + $0x330] sm:$0xff] %v534
      %1047 = vst [vmem:[%s235 + $0x338] sm:$0xff] %v535
      %1048 = vst [vmem:[%s235 + $0x340] sm:$0xff] %v536
      %1049 = vst [vmem:[%s235 + $0x348] sm:$0xff] %v537
      %1050 = vst [vmem:[%s235 + $0x350] sm:$0xff] %v538
      %1051 = vst [vmem:[%s235 + $0x358] sm:$0xff] %v539
      %1052 = vst [vmem:[%s235 + $0x360] sm:$0xff] %v540
      %1053 = vst [vmem:[%s235 + $0x368] sm:$0xff] %v541
      %1054 = vst [vmem:[%s235 + $0x370] sm:$0xff] %v542
      %1055 = vst [vmem:[%s235 + $0x378] sm:$0xff] %v543
      %1056 = vst [vmem:[%s235 + $0x380] sm:$0xff] %v544
      %1057 = vst [vmem:[%s235 + $0x388] sm:$0xff] %v545
      %1058 = vst [vmem:[%s235 + $0x390] sm:$0xff] %v546
      %1059 = vst [vmem:[%s235 + $0x398] sm:$0xff] %v547
      %1060 = vst [vmem:[%s235 + $0x3a0] sm:$0xff] %v548
      %1061 = vst [vmem:[%s235 + $0x3a8] sm:$0xff] %v549
      %1062 = vst [vmem:[%s235 + $0x3b0] sm:$0xff] %v550
      %1063 = vst [vmem:[%s235 + $0x3b8] sm:$0xff] %v551
      %1064 = vst [vmem:[%s235 + $0x3c0] sm:$0xff] %v552
      %1065 = vst [vmem:[%s235 + $0x3c8] sm:$0xff] %v553
      %1066 = vst [vmem:[%s235 + $0x3d0] sm:$0xff] %v554
      %1067 = vst [vmem:[%s235 + $0x3d8] sm:$0xff] %v555
      %1068 = vst [vmem:[%s235 + $0x3e0] sm:$0xff] %v556
      %1069 = vst [vmem:[%s235 + $0x3e8] sm:$0xff] %v557
      %1070 = vst [vmem:[%s235 + $0x3f0] sm:$0xff] %v558
      %1071 = vst [vmem:[%s235 + $0x3f8] sm:$0xff] %v559
      %1072 = vst [vmem:[%s235 + $0x400] sm:$0xff] %v560
      %1073 = vst [vmem:[%s235 + $0x408] sm:$0xff] %v561
      %1074 = vst [vmem:[%s235 + $0x410] sm:$0xff] %v562
      %1075 = vst [vmem:[%s235 + $0x418] sm:$0xff] %v563
      %1076 = vst [vmem:[%s235 + $0x420] sm:$0xff] %v564
      %1077 = vst [vmem:[%s235 + $0x428] sm:$0xff] %v565
      %1078 = vst [vmem:[%s235 + $0x430] sm:$0xff] %v566
      %1079 = vst [vmem:[%s235 + $0x438] sm:$0xff] %v567
      %1080 = vst [vmem:[%s235 + $0x440] sm:$0xff] %v568
      %1081 = vst [vmem:[%s235 + $0x448] sm:$0xff] %v569
      %1082 = vst [vmem:[%s235 + $0x450] sm:$0xff] %v570
      %1083 = vst [vmem:[%s235 + $0x458] sm:$0xff] %v571
      %1084 = vst [vmem:[%s235 + $0x460] sm:$0xff] %v572
      %1085 = vst [vmem:[%s235 + $0x468] sm:$0xff] %v573
      %1086 = vst [vmem:[%s235 + $0x470] sm:$0xff] %v574
      %1087 = vst [vmem:[%s235 + $0x478] sm:$0xff] %v575
      %1088 = vst [vmem:[%s235 + $0x480] sm:$0xff] %v576
      %1089 = vst [vmem:[%s235 + $0x488] sm:$0xff] %v577
      %1090 = vst [vmem:[%s235 + $0x490] sm:$0xff] %v578
      %1091 = vst [vmem:[%s235 + $0x498] sm:$0xff] %v579
      %1092 = vst [vmem:[%s235 + $0x4a0] sm:$0xff] %v580
      %1093 = vst [vmem:[%s235 + $0x4a8] sm:$0xff] %v581
      %1094 = vst [vmem:[%s235 + $0x4b0] sm:$0xff] %v582
      %1095 = vst [vmem:[%s235 + $0x4b8] sm:$0xff] %v583
      %1096 = vst [vmem:[%s235 + $0x4c0] sm:$0xff] %v584
      %1097 = vst [vmem:[%s235 + $0x4c8] sm:$0xff] %v585
      %1098 = vst [vmem:[%s235 + $0x4d0] sm:$0xff] %v586
      %1099 = vst [vmem:[%s235 + $0x4d8] sm:$0xff] %v587
      %1100 = vst [vmem:[%s235 + $0x4e0] sm:$0xff] %v588
      %1101 = vst [vmem:[%s235 + $0x4e8] sm:$0xff] %v589
      %1102 = vst [vmem:[%s235 + $0x4f0] sm:$0xff] %v590
      %1103 = vst [vmem:[%s235 + $0x4f8] sm:$0xff] %v591
      %1104 = vst [vmem:[%s235 + $0x500] sm:$0xff] %v592
      %1105 = vst [vmem:[%s235 + $0x508] sm:$0xff] %v593
      %1106 = vst [vmem:[%s235 + $0x510] sm:$0xff] %v594
      %1107 = vst [vmem:[%s235 + $0x518] sm:$0xff] %v595
      %1108 = vst [vmem:[%s235 + $0x520] sm:$0xff] %v596
      %1109 = vst [vmem:[%s235 + $0x528] sm:$0xff] %v597
      %1110 = vst [vmem:[%s235 + $0x530] sm:$0xff] %v598
      %1111 = vst [vmem:[%s235 + $0x538] sm:$0xff] %v599
      %1112 = vst [vmem:[%s235 + $0x540] sm:$0xff] %v600
      %1113 = vst [vmem:[%s235 + $0x548] sm:$0xff] %v601
      %1114 = vst [vmem:[%s235 + $0x550] sm:$0xff] %v602
      %1115 = vst [vmem:[%s235 + $0x558] sm:$0xff] %v603
      %1116 = vst [vmem:[%s235 + $0x560] sm:$0xff] %v604
      %1117 = vst [vmem:[%s235 + $0x568] sm:$0xff] %v605
      %1118 = vst [vmem:[%s235 + $0x570] sm:$0xff] %v606
      %1119 = vst [vmem:[%s235 + $0x578] sm:$0xff] %v607
      %1120 = vst [vmem:[%s235 + $0x580] sm:$0xff] %v608
      %1121 = vst [vmem:[%s235 + $0x588] sm:$0xff] %v609
      %1122 = vst [vmem:[%s235 + $0x590] sm:$0xff] %v610
      %1123 = vst [vmem:[%s235 + $0x598] sm:$0xff] %v611
      %1124 = vst [vmem:[%s235 + $0x5a0] sm:$0xff] %v612
      %1125 = vst [vmem:[%s235 + $0x5a8] sm:$0xff] %v613
      %1126 = vst [vmem:[%s235 + $0x5b0] sm:$0xff] %v614
      %1127 = vst [vmem:[%s235 + $0x5b8] sm:$0xff] %v615
      %1128 = vst [vmem:[%s235 + $0x5c0] sm:$0xff] %v616
      %1129 = vst [vmem:[%s235 + $0x5c8] sm:$0xff] %v617
      %1130 = vst [vmem:[%s235 + $0x5d0] sm:$0xff] %v618
      %1131 = vst [vmem:[%s235 + $0x5d8] sm:$0xff] %v619
      %1132 = vst [vmem:[%s235 + $0x5e0] sm:$0xff] %v620
      %1133 = vst [vmem:[%s235 + $0x5e8] sm:$0xff] %v621
      %1134 = vst [vmem:[%s235 + $0x5f0] sm:$0xff] %v622
      %1135 = vst [vmem:[%s235 + $0x5f8] sm:$0xff] %v623
      %1136 = vst [vmem:[%s235 + $0x600] sm:$0xff] %v624
      %1137 = vst [vmem:[%s235 + $0x608] sm:$0xff] %v625
      %1138 = vst [vmem:[%s235 + $0x610] sm:$0xff] %v626
      %1139 = vst [vmem:[%s235 + $0x618] sm:$0xff] %v627
      %1140 = vst [vmem:[%s235 + $0x620] sm:$0xff] %v628
      %1141 = vst [vmem:[%s235 + $0x628] sm:$0xff] %v629
      %1142 = vst [vmem:[%s235 + $0x630] sm:$0xff] %v630
      %1143 = vst [vmem:[%s235 + $0x638] sm:$0xff] %v631
      %1144 = vst [vmem:[%s235 + $0x640] sm:$0xff] %v632
      %1145 = vst [vmem:[%s235 + $0x648] sm:$0xff] %v633
      %1146 = vst [vmem:[%s235 + $0x650] sm:$0xff] %v634
      %1147 = vst [vmem:[%s235 + $0x658] sm:$0xff] %v635
      %1148 = vst [vmem:[%s235 + $0x660] sm:$0xff] %v636
      %1149 = vst [vmem:[%s235 + $0x668] sm:$0xff] %v637
      %1150 = vst [vmem:[%s235 + $0x670] sm:$0xff] %v638
      %1151 = vst [vmem:[%s235 + $0x678] sm:$0xff] %v639
      %1152 = vst [vmem:[%s235 + $0x680] sm:$0xff] %v640
      %1153 = vst [vmem:[%s235 + $0x688] sm:$0xff] %v641
      %1154 = vst [vmem:[%s235 + $0x690] sm:$0xff] %v642
      %1155 = vst [vmem:[%s235 + $0x698] sm:$0xff] %v643
      %1156 = vst [vmem:[%s235 + $0x6a0] sm:$0xff] %v644
      %1157 = vst [vmem:[%s235 + $0x6a8] sm:$0xff] %v645
      %1158 = vst [vmem:[%s235 + $0x6b0] sm:$0xff] %v646
      %1159 = vst [vmem:[%s235 + $0x6b8] sm:$0xff] %v647
      %1160 = vst [vmem:[%s235 + $0x6c0] sm:$0xff] %v648
      %1161 = vst [vmem:[%s235 + $0x6c8] sm:$0xff] %v649
      %1162 = vst [vmem:[%s235 + $0x6d0] sm:$0xff] %v650
      %1163 = vst [vmem:[%s235 + $0x6d8] sm:$0xff] %v651
      %1164 = vst [vmem:[%s235 + $0x6e0] sm:$0xff] %v652
      %1165 = vst [vmem:[%s235 + $0x6e8] sm:$0xff] %v653
      %1166 = vst [vmem:[%s235 + $0x6f0] sm:$0xff] %v654
      %1167 = vst [vmem:[%s235 + $0x6f8] sm:$0xff] %v655
      %1168 = vst [vmem:[%s235 + $0x700] sm:$0xff] %v656
      %1169 = vst [vmem:[%s235 + $0x708] sm:$0xff] %v657
      %1170 = vst [vmem:[%s235 + $0x710] sm:$0xff] %v658
      %1171 = vst [vmem:[%s235 + $0x718] sm:$0xff] %v659
      %1172 = vst [vmem:[%s235 + $0x720] sm:$0xff] %v660
      %1173 = vst [vmem:[%s235 + $0x728] sm:$0xff] %v661
      %1174 = vst [vmem:[%s235 + $0x730] sm:$0xff] %v662
      %1175 = vst [vmem:[%s235 + $0x738] sm:$0xff] %v663
      %1176 = vst [vmem:[%s235 + $0x740] sm:$0xff] %v664
      %1177 = vst [vmem:[%s235 + $0x748] sm:$0xff] %v665
      %1178 = vst [vmem:[%s235 + $0x750] sm:$0xff] %v666
      %1179 = vst [vmem:[%s235 + $0x758] sm:$0xff] %v667
      %1180 = vst [vmem:[%s235 + $0x760] sm:$0xff] %v668
      %1181 = vst [vmem:[%s235 + $0x768] sm:$0xff] %v669
      %1182 = vst [vmem:[%s235 + $0x770] sm:$0xff] %v670
      %1183 = vst [vmem:[%s235 + $0x778] sm:$0xff] %v671
      %1184 = vst [vmem:[%s235 + $0x780] sm:$0xff] %v672
      %1185 = vst [vmem:[%s235 + $0x788] sm:$0xff] %v673
      %1186 = vst [vmem:[%s235 + $0x790] sm:$0xff] %v674
      %1187 = vst [vmem:[%s235 + $0x798] sm:$0xff] %v675
      %1188 = vst [vmem:[%s235 + $0x7a0] sm:$0xff] %v676
      %1189 = vst [vmem:[%s235 + $0x7a8] sm:$0xff] %v677
      %1190 = vst [vmem:[%s235 + $0x7b0] sm:$0xff] %v678
      %1191 = vst [vmem:[%s235 + $0x7b8] sm:$0xff] %v679
      %1192 = vst [vmem:[%s235 + $0x7c0] sm:$0xff] %v680
      %1193 = vst [vmem:[%s235 + $0x7c8] sm:$0xff] %v681
      %1194 = vst [vmem:[%s235 + $0x7d0] sm:$0xff] %v682
      %1195 = vst [vmem:[%s235 + $0x7d8] sm:$0xff] %v683
      %1196 = vst [vmem:[%s235 + $0x7e0] sm:$0xff] %v684
      %1197 = vst [vmem:[%s235 + $0x7e8] sm:$0xff] %v685
      %1198 = vst [vmem:[%s235 + $0x7f0] sm:$0xff] %v686
      %1199 = vst [vmem:[%s235 + $0x7f8] sm:$0xff] %v687
      %1200 = vst [vmem:[%s235 + $0x800] sm:$0xff] %v688
      %1201 = vst [vmem:[%s235 + $0x808] sm:$0xff] %v689
      %1202 = vst [vmem:[%s235 + $0x810] sm:$0xff] %v690
      %1203 = vst [vmem:[%s235 + $0x818] sm:$0xff] %v691
      %1204 = vst [vmem:[%s235 + $0x820] sm:$0xff] %v692
      %1205 = vst [vmem:[%s235 + $0x828] sm:$0xff] %v693
      %1206 = vst [vmem:[%s235 + $0x830] sm:$0xff] %v694
      %1207 = vst [vmem:[%s235 + $0x838] sm:$0xff] %v695
      %1208 = vst [vmem:[%s235 + $0x840] sm:$0xff] %v696
      %1209 = vst [vmem:[%s235 + $0x848] sm:$0xff] %v697
      %1210 = vst [vmem:[%s235 + $0x850] sm:$0xff] %v698
      %1211 = vst [vmem:[%s235 + $0x858] sm:$0xff] %v699
      %1212 = vst [vmem:[%s235 + $0x860] sm:$0xff] %v700
      %1213 = vst [vmem:[%s235 + $0x868] sm:$0xff] %v701
      %1214 = vst [vmem:[%s235 + $0x870] sm:$0xff] %v702
      %1215 = vst [vmem:[%s235 + $0x878] sm:$0xff] %v703
      %1216 = vst [vmem:[%s235 + $0x880] sm:$0xff] %v704
      %1217 = vst [vmem:[%s235 + $0x888] sm:$0xff] %v705
      %1218 = vst [vmem:[%s235 + $0x890] sm:$0xff] %v706
      %1219 = vst [vmem:[%s235 + $0x898] sm:$0xff] %v707
      %1220 = vst [vmem:[%s235 + $0x8a0] sm:$0xff] %v708
      %1221 = vst [vmem:[%s235 + $0x8a8] sm:$0xff] %v709
      %1222 = vst [vmem:[%s235 + $0x8b0] sm:$0xff] %v710
      %1223 = vst [vmem:[%s235 + $0x8b8] sm:$0xff] %v711
      %1224 = vst [vmem:[%s235 + $0x8c0] sm:$0xff] %v712
      %1225 = vst [vmem:[%s235 + $0x8c8] sm:$0xff] %v713
      %1226 = vst [vmem:[%s235 + $0x8d0] sm:$0xff] %v714
      %1227 = vst [vmem:[%s235 + $0x8d8] sm:$0xff] %v715
      %1228 = vst [vmem:[%s235 + $0x8e0] sm:$0xff] %v716
      %1229 = vst [vmem:[%s235 + $0x8e8] sm:$0xff] %v717
      %1230 = vst [vmem:[%s235 + $0x8f0] sm:$0xff] %v718
      %1231 = vst [vmem:[%s235 + $0x8f8] sm:$0xff] %v719
      %1232 = vst [vmem:[%s235 + $0x900] sm:$0xff] %v720
      %1233 = vst [vmem:[%s235 + $0x908] sm:$0xff] %v721
      %1234 = vst [vmem:[%s235 + $0x910] sm:$0xff] %v722
      %1235 = vst [vmem:[%s235 + $0x918] sm:$0xff] %v723
      %1236 = vst [vmem:[%s235 + $0x920] sm:$0xff] %v724
      %1237 = vst [vmem:[%s235 + $0x928] sm:$0xff] %v725
      %1238 = vst [vmem:[%s235 + $0x930] sm:$0xff] %v726
      %1239 = vst [vmem:[%s235 + $0x938] sm:$0xff] %v727
      %1240 = vst [vmem:[%s235 + $0x940] sm:$0xff] %v728
      %1241 = vst [vmem:[%s235 + $0x948] sm:$0xff] %v729
      %1242 = vst [vmem:[%s235 + $0x950] sm:$0xff] %v730
      %1243 = vst [vmem:[%s235 + $0x958] sm:$0xff] %v731
      %1244 = vst [vmem:[%s235 + $0x960] sm:$0xff] %v732
      %1245 = vst [vmem:[%s235 + $0x968] sm:$0xff] %v733
      %1246 = vst [vmem:[%s235 + $0x970] sm:$0xff] %v734
      %1247 = vst [vmem:[%s235 + $0x978] sm:$0xff] %v735
      %1248 = vst [vmem:[%s235 + $0x980] sm:$0xff] %v736
      %1249 = vst [vmem:[%s235 + $0x988] sm:$0xff] %v737
      %1250 = vst [vmem:[%s235 + $0x990] sm:$0xff] %v738
      %1251 = vst [vmem:[%s235 + $0x998] sm:$0xff] %v739
      %1252 = vst [vmem:[%s235 + $0x9a0] sm:$0xff] %v740
      %1253 = vst [vmem:[%s235 + $0x9a8] sm:$0xff] %v741
      %1254 = vst [vmem:[%s235 + $0x9b0] sm:$0xff] %v742
      %1255 = vst [vmem:[%s235 + $0x9b8] sm:$0xff] %v743
      %1256 = vst [vmem:[%s235 + $0x9c0] sm:$0xff] %v744
      %1257 = vst [vmem:[%s235 + $0x9c8] sm:$0xff] %v745
      %1258 = vst [vmem:[%s235 + $0x9d0] sm:$0xff] %v746
      %1259 = vst [vmem:[%s235 + $0x9d8] sm:$0xff] %v747
      %1260 = vst [vmem:[%s235 + $0x9e0] sm:$0xff] %v748
      %1261 = vst [vmem:[%s235 + $0x9e8] sm:$0xff] %v749
      %1262 = vst [vmem:[%s235 + $0x9f0] sm:$0xff] %v750
      %1263 = vst [vmem:[%s235 + $0x9f8] sm:$0xff] %v751
      %1264 = vst [vmem:[%s235 + $0xa00] sm:$0xff] %v752
      %1265 = vst [vmem:[%s235 + $0xa08] sm:$0xff] %v753
      %1266 = vst [vmem:[%s235 + $0xa10] sm:$0xff] %v754
      %1267 = vst [vmem:[%s235 + $0xa18] sm:$0xff] %v755
      %1268 = vst [vmem:[%s235 + $0xa20] sm:$0xff] %v756
      %1269 = vst [vmem:[%s235 + $0xa28] sm:$0xff] %v757
      %1270 = vst [vmem:[%s235 + $0xa30] sm:$0xff] %v758
      %1271 = vst [vmem:[%s235 + $0xa38] sm:$0xff] %v759
      %1272 = vst [vmem:[%s235 + $0xa40] sm:$0xff] %v760
      %1273 = vst [vmem:[%s235 + $0xa48] sm:$0xff] %v761
      %1274 = vst [vmem:[%s235 + $0xa50] sm:$0xff] %v762
      %1275 = vst [vmem:[%s235 + $0xa58] sm:$0xff] %v763
      %1276 = vst [vmem:[%s235 + $0xa60] sm:$0xff] %v764
      %1277 = vst [vmem:[%s235 + $0xa68] sm:$0xff] %v765
      %1278 = vst [vmem:[%s235 + $0xa70] sm:$0xff] %v766
      %1279 = vst [vmem:[%s235 + $0xa78] sm:$0xff] %v767
      %1280 = vst [vmem:[%s235 + $0xa80] sm:$0xff] %v768
      %1281 = vst [vmem:[%s235 + $0xa88] sm:$0xff] %v769
      %1282 = vst [vmem:[%s235 + $0xa90] sm:$0xff] %v770
      %1283 = vst [vmem:[%s235 + $0xa98] sm:$0xff] %v771
      %1284 = vst [vmem:[%s235 + $0xaa0] sm:$0xff] %v772
      %1285 = vst [vmem:[%s235 + $0xaa8] sm:$0xff] %v773
      %1286 = vst [vmem:[%s235 + $0xab0] sm:$0xff] %v774
      %1287 = vst [vmem:[%s235 + $0xab8] sm:$0xff] %v775
      %1288 = vst [vmem:[%s235 + $0xac0] sm:$0xff] %v776
      %1289 = vst [vmem:[%s235 + $0xac8] sm:$0xff] %v777
      %1290 = vst [vmem:[%s235 + $0xad0] sm:$0xff] %v778
      %1291 = vst [vmem:[%s235 + $0xad8] sm:$0xff] %v779
      %1292 = vst [vmem:[%s235 + $0xae0] sm:$0xff] %v780
      %1293 = vst [vmem:[%s235 + $0xae8] sm:$0xff] %v781
      %1294 = vst [vmem:[%s235 + $0xaf0] sm:$0xff] %v782
      %1295 = vst [vmem:[%s235 + $0xaf8] sm:$0xff] %v783
      %1296 = vst [vmem:[%s235 + $0xb00] sm:$0xff] %v784
      %1297 = vst [vmem:[%s235 + $0xb08] sm:$0xff] %v785
      %1298 = vst [vmem:[%s235 + $0xb10] sm:$0xff] %v786
      %1299 = vst [vmem:[%s235 + $0xb18] sm:$0xff] %v787
      %1300 = vst [vmem:[%s235 + $0xb20] sm:$0xff] %v788
      %1301 = vst [vmem:[%s235 + $0xb28] sm:$0xff] %v789
      %1302 = vst [vmem:[%s235 + $0xb30] sm:$0xff] %v790
      %1303 = vst [vmem:[%s235 + $0xb38] sm:$0xff] %v791
      %1304 = vst [vmem:[%s235 + $0xb40] sm:$0xff] %v792
      %1305 = vst [vmem:[%s235 + $0xb48] sm:$0xff] %v793
      %1306 = vst [vmem:[%s235 + $0xb50] sm:$0xff] %v794
      %1307 = vst [vmem:[%s235 + $0xb58] sm:$0xff] %v795
      %1308 = vst [vmem:[%s235 + $0xb60] sm:$0xff] %v796
      %1309 = vst [vmem:[%s235 + $0xb68] sm:$0xff] %v797
      %1310 = vst [vmem:[%s235 + $0xb70] sm:$0xff] %v798
      %1311 = vst [vmem:[%s235 + $0xb78] sm:$0xff] %v799
      %1312 = vst [vmem:[%s235 + $0xb80] sm:$0xff] %v800
      %1313 = vst [vmem:[%s235 + $0xb88] sm:$0xff] %v801
      %1314 = vst [vmem:[%s235 + $0xb90] sm:$0xff] %v802
      %1315 = vst [vmem:[%s235 + $0xb98] sm:$0xff] %v803
      %1316 = vst [vmem:[%s235 + $0xba0] sm:$0xff] %v804
      %1317 = vst [vmem:[%s235 + $0xba8] sm:$0xff] %v805
      %1318 = vst [vmem:[%s235 + $0xbb0] sm:$0xff] %v806
      %1319 = vst [vmem:[%s235 + $0xbb8] sm:$0xff] %v807
      %1320 = vst [vmem:[%s235 + $0xbc0] sm:$0xff] %v808
      %1321 = vst [vmem:[%s235 + $0xbc8] sm:$0xff] %v809
      %1322 = vst [vmem:[%s235 + $0xbd0] sm:$0xff] %v810
      %1323 = vst [vmem:[%s235 + $0xbd8] sm:$0xff] %v811
      %1324 = vst [vmem:[%s235 + $0xbe0] sm:$0xff] %v812
      %1325 = vst [vmem:[%s235 + $0xbe8] sm:$0xff] %v813
      %1326 = vst [vmem:[%s235 + $0xbf0] sm:$0xff] %v814
      %1327 = vst [vmem:[%s235 + $0xbf8] sm:$0xff] %v815
      %1328 = vst [vmem:[%s235 + $0xc00] sm:$0xff] %v816
      %1329 = vst [vmem:[%s235 + $0xc08] sm:$0xff] %v817
      %1330 = vst [vmem:[%s235 + $0xc10] sm:$0xff] %v818
      %1331 = vst [vmem:[%s235 + $0xc18] sm:$0xff] %v819
      %1332 = vst [vmem:[%s235 + $0xc20] sm:$0xff] %v820
      %1333 = vst [vmem:[%s235 + $0xc28] sm:$0xff] %v821
      %1334 = vst [vmem:[%s235 + $0xc30] sm:$0xff] %v822
      %1335 = vst [vmem:[%s235 + $0xc38] sm:$0xff] %v823
      %1336 = vst [vmem:[%s235 + $0xc40] sm:$0xff] %v824
      %1337 = vst [vmem:[%s235 + $0xc48] sm:$0xff] %v825
      %1338 = vst [vmem:[%s235 + $0xc50] sm:$0xff] %v826
      %1339 = vst [vmem:[%s235 + $0xc58] sm:$0xff] %v827
      %1340 = vst [vmem:[%s235 + $0xc60] sm:$0xff] %v828
      %1341 = vst [vmem:[%s235 + $0xc68] sm:$0xff] %v829
      %1342 = vst [vmem:[%s235 + $0xc70] sm:$0xff] %v830
      %1343 = vst [vmem:[%s235 + $0xc78] sm:$0xff] %v831
      %1344 = vst [vmem:[%s235 + $0xc80] sm:$0xff] %v832
      %1345 = vst [vmem:[%s235 + $0xc88] sm:$0xff] %v833
      %1346 = vst [vmem:[%s235 + $0xc90] sm:$0xff] %v834
      %1347 = vst [vmem:[%s235 + $0xc98] sm:$0xff] %v835
      %1348 = vst [vmem:[%s235 + $0xca0] sm:$0xff] %v836
      %1349 = vst [vmem:[%s235 + $0xca8] sm:$0xff] %v837
      %1350 = vst [vmem:[%s235 + $0xcb0] sm:$0xff] %v838
      %1351 = vst [vmem:[%s235 + $0xcb8] sm:$0xff] %v839
      %1352 = vst [vmem:[%s235 + $0xcc0] sm:$0xff] %v840
      %1353 = vst [vmem:[%s235 + $0xcc8] sm:$0xff] %v841
      %1354 = vst [vmem:[%s235 + $0xcd0] sm:$0xff] %v842
      %1355 = vst [vmem:[%s235 + $0xcd8] sm:$0xff] %v843
      %1356 = vst [vmem:[%s235 + $0xce0] sm:$0xff] %v844
      %1357 = vst [vmem:[%s235 + $0xce8] sm:$0xff] %v845
      %1358 = vst [vmem:[%s235 + $0xcf0] sm:$0xff] %v846
      %1359 = vst [vmem:[%s235 + $0xcf8] sm:$0xff] %v847
      %1360 = vst [vmem:[%s235 + $0xd00] sm:$0xff] %v848
      %1361 = vst [vmem:[%s235 + $0xd08] sm:$0xff] %v849
      %1362 = vst [vmem:[%s235 + $0xd10] sm:$0xff] %v850
      %1363 = vst [vmem:[%s235 + $0xd18] sm:$0xff] %v851
      %1364 = vst [vmem:[%s235 + $0xd20] sm:$0xff] %v852
      %1365 = vst [vmem:[%s235 + $0xd28] sm:$0xff] %v853
      %1366 = vst [vmem:[%s235 + $0xd30] sm:$0xff] %v854
      %1367 = vst [vmem:[%s235 + $0xd38] sm:$0xff] %v855
      %1368 = vst [vmem:[%s235 + $0xd40] sm:$0xff] %v856
      %1369 = vst [vmem:[%s235 + $0xd48] sm:$0xff] %v857
      %1370 = vst [vmem:[%s235 + $0xd50] sm:$0xff] %v858
      %1371 = vst [vmem:[%s235 + $0xd58] sm:$0xff] %v859
      %1372 = vst [vmem:[%s235 + $0xd60] sm:$0xff] %v860
      %1373 = vst [vmem:[%s235 + $0xd68] sm:$0xff] %v861
      %1374 = vst [vmem:[%s235 + $0xd70] sm:$0xff] %v862
      %1375 = vst [vmem:[%s235 + $0xd78] sm:$0xff] %v863
      %1376 = vst [vmem:[%s235 + $0xd80] sm:$0xff] %v864
      %1377 = vst [vmem:[%s235 + $0xd88] sm:$0xff] %v865
      %1378 = vst [vmem:[%s235 + $0xd90] sm:$0xff] %v866
      %1379 = vst [vmem:[%s235 + $0xd98] sm:$0xff] %v867
      %1380 = vst [vmem:[%s235 + $0xda0] sm:$0xff] %v868
      %1381 = vst [vmem:[%s235 + $0xda8] sm:$0xff] %v869
      %1382 = vst [vmem:[%s235 + $0xdb0] sm:$0xff] %v870
      %1383 = vst [vmem:[%s235 + $0xdb8] sm:$0xff] %v871
      %1384 = vst [vmem:[%s235 + $0xdc0] sm:$0xff] %v872
      %1385 = vst [vmem:[%s235 + $0xdc8] sm:$0xff] %v873
      %1386 = vst [vmem:[%s235 + $0xdd0] sm:$0xff] %v874
      %1387 = vst [vmem:[%s235 + $0xdd8] sm:$0xff] %v875
      %1388 = vst [vmem:[%s235 + $0xde0] sm:$0xff] %v876
      %1389 = vst [vmem:[%s235 + $0xde8] sm:$0xff] %v877
      %1390 = vst [vmem:[%s235 + $0xdf0] sm:$0xff] %v878
      %1391 = vst [vmem:[%s235 + $0xdf8] sm:$0xff] %v879
      %1392 = vst [vmem:[%s235 + $0xe00] sm:$0xff] %v880
      %1393 = vst [vmem:[%s235 + $0xe08] sm:$0xff] %v881
      %1394 = vst [vmem:[%s235 + $0xe10] sm:$0xff] %v882
      %1395 = vst [vmem:[%s235 + $0xe18] sm:$0xff] %v883
      %1396 = vst [vmem:[%s235 + $0xe20] sm:$0xff] %v884
      %1397 = vst [vmem:[%s235 + $0xe28] sm:$0xff] %v885
      %1398 = vst [vmem:[%s235 + $0xe30] sm:$0xff] %v886
      %1399 = vst [vmem:[%s235 + $0xe38] sm:$0xff] %v887
      %1400 = vst [vmem:[%s235 + $0xe40] sm:$0xff] %v888
      %1401 = vst [vmem:[%s235 + $0xe48] sm:$0xff] %v889
      %1402 = vst [vmem:[%s235 + $0xe50] sm:$0xff] %v890
      %1403 = vst [vmem:[%s235 + $0xe58] sm:$0xff] %v891
      %1404 = vst [vmem:[%s235 + $0xe60] sm:$0xff] %v892
      %1405 = vst [vmem:[%s235 + $0xe68] sm:$0xff] %v893
      %1406 = vst [vmem:[%s235 + $0xe70] sm:$0xff] %v894
      %1407 = vst [vmem:[%s235 + $0xe78] sm:$0xff] %v895
      %1408 = vst [vmem:[%s235 + $0xe80] sm:$0xff] %v896
      %1409 = vst [vmem:[%s235 + $0xe88] sm:$0xff] %v897
      %1410 = vst [vmem:[%s235 + $0xe90] sm:$0xff] %v898
      %1411 = vst [vmem:[%s235 + $0xe98] sm:$0xff] %v899
      %1412 = vst [vmem:[%s235 + $0xea0] sm:$0xff] %v900
      %1413 = vst [vmem:[%s235 + $0xea8] sm:$0xff] %v901
      %1414 = vst [vmem:[%s235 + $0xeb0] sm:$0xff] %v902
      %1415 = vst [vmem:[%s235 + $0xeb8] sm:$0xff] %v903
      %1416 = vst [vmem:[%s235 + $0xec0] sm:$0xff] %v904
      %1417 = vst [vmem:[%s235 + $0xec8] sm:$0xff] %v905
      %1418 = vst [vmem:[%s235 + $0xed0] sm:$0xff] %v906
      %1419 = vst [vmem:[%s235 + $0xed8] sm:$0xff] %v907
      %1420 = vst [vmem:[%s235 + $0xee0] sm:$0xff] %v908
      %1421 = vst [vmem:[%s235 + $0xee8] sm:$0xff] %v909
      %1422 = vst [vmem:[%s235 + $0xef0] sm:$0xff] %v910
      %1423 = vst [vmem:[%s235 + $0xef8] sm:$0xff] %v911
      %1424 = vst [vmem:[%s235 + $0xf00] sm:$0xff] %v912
      %1425 = vst [vmem:[%s235 + $0xf08] sm:$0xff] %v913
      %1426 = vst [vmem:[%s235 + $0xf10] sm:$0xff] %v914
      %1427 = vst [vmem:[%s235 + $0xf18] sm:$0xff] %v915
      %1428 = vst [vmem:[%s235 + $0xf20] sm:$0xff] %v916
      %1429 = vst [vmem:[%s235 + $0xf28] sm:$0xff] %v917
      %1430 = vst [vmem:[%s235 + $0xf30] sm:$0xff] %v918
      %1431 = vst [vmem:[%s235 + $0xf38] sm:$0xff] %v919
      %1432 = vst [vmem:[%s235 + $0xf40] sm:$0xff] %v920
      %1433 = vst [vmem:[%s235 + $0xf48] sm:$0xff] %v921
      %1434 = vst [vmem:[%s235 + $0xf50] sm:$0xff] %v922
      %1435 = vst [vmem:[%s235 + $0xf58] sm:$0xff] %v923
      %1436 = vst [vmem:[%s235 + $0xf60] sm:$0xff] %v924
      %1437 = vst [vmem:[%s235 + $0xf68] sm:$0xff] %v925
      %1438 = vst [vmem:[%s235 + $0xf70] sm:$0xff] %v926
      %1439 = vst [vmem:[%s235 + $0xf78] sm:$0xff] %v927
      %1440 = vst [vmem:[%s235 + $0xf80] sm:$0xff] %v928
      %1441 = vst [vmem:[%s235 + $0xf88] sm:$0xff] %v929
      %1442 = vst [vmem:[%s235 + $0xf90] sm:$0xff] %v930
      %1443 = vst [vmem:[%s235 + $0xf98] sm:$0xff] %v931
      %1444 = vst [vmem:[%s235 + $0xfa0] sm:$0xff] %v932
      %1445 = vst [vmem:[%s235 + $0xfa8] sm:$0xff] %v933
      %1446 = vst [vmem:[%s235 + $0xfb0] sm:$0xff] %v934
      %1447 = vst [vmem:[%s235 + $0xfb8] sm:$0xff] %v935
      %1448 = vst [vmem:[%s235 + $0xfc0] sm:$0xff] %v936
      %1449 = vst [vmem:[%s235 + $0xfc8] sm:$0xff] %v937
      %1450 = vst [vmem:[%s235 + $0xfd0] sm:$0xff] %v938
      %1451 = vst [vmem:[%s235 + $0xfd8] sm:$0xff] %v939
      %1452 = vst [vmem:[%s235 + $0xfe0] sm:$0xff] %v940
      %1453 = vst [vmem:[%s235 + $0xfe8] sm:$0xff] %v941
      %1454 = vst [vmem:[%s235 + $0xff0] sm:$0xff] %v942
      %1455 = vst [vmem:[%s235 + $0xff8] sm:$0xff] %v943
      %s1456 = smul.u32 128, %s20
      %p1457 = scmp.lt.s32.totalorder %s19, 1
      %s1458 = scalar_select %p1457, %s19, 1
      %p1459 = scmp.lt.s32.totalorder %s1456, 127
      %s1460 = scalar_select %p1459, %s1456, 127
      %s1461 = smul.addr %s1458, 512
      %s1462 = sadd.s32 %s1460, %s1461
      %s1463 = smul.addr %s1462, 8
      %s1464 = scalar_lea.vmem %s4, %s1463
      // Predicated region
      $region37: #{branch_trunk.1} parent=35 // pred_check
        %p1465 = pneg %p138
      $region38: #{branch_trunk.1} parent=35 // pred_check_branch
        %1467 = sbr.rel (%p1465) target = $region40
      $region39: #{branch_trunk.1} parent=35 // pred_region
        %s1468 = smul.u32 128, %s20
      $region40: #{branch_trunk.1} parent=35 // pred_fallthru
        _
    $region36: #{branch_trunk.1} parent=5 // pred_fallthru
      _
    %p1469 = scmp.le.s32.totalorder 2, %s10
    // Predicated region
    $region41: #{branch_trunk.1} parent=5 // pred_check
      %p1470 = pneg %p1469
    $region42: #{branch_trunk.1} parent=5 // pred_check_branch
      %1472 = sbr.rel (%p1470) target = $region44
    $region43: #{branch_trunk.1} parent=5 // pred_region
      %s1473 = ssub.s32 %s10, 2
      // Predicated region
      $region45: #{branch_trunk.1} parent=43 // pred_check
        %p1474 = pneg %p144
      $region46: #{branch_trunk.1} parent=43 // pred_check_branch
        %1476 = sbr.rel (%p1474) target = $region48
      $region47: #{branch_trunk.1} parent=43 // pred_region
        %s1477 = smul.u32 128, %s22
        %p1478 = scmp.lt.s32.totalorder %s21, 1
        %s1479 = scalar_select %p1478, %s21, 1
        %p1480 = scmp.lt.s32.totalorder %s1477, 127
        %s1481 = scalar_select %p1480, %s1477, 127
        %s1482 = smul.addr %s1479, 512
        %s1483 = sadd.s32 %s1481, %s1482
        %s1484 = smul.addr %s1483, 8
        %s1485 = scalar_lea.vmem %s4, %s1484
      $region48: #{branch_trunk.1} parent=43 // pred_fallthru
        _
    $region44: #{branch_trunk.1} parent=5 // pred_fallthru
      _
  $region6: #{branch_trunk.1} parent=0 // loop_footer
    %s14 = sadd.s32 1, %s10
  $region7: #{branch_trunk.1} parent=0 // loop_footer_branch
    %9 = sbr.rel target = $region3
  $region8: #{branch_trunk.1} parent=0 // loop_exit
    _

</llo_original>
